<compile_context>
chip_gen: v5e
topology: v5e:2x2
jax: 0.10.0
libtpu: 0.0.40
codegen_flags: <defaults>
</compile_context>

<pallas_src>
import functools

import jax
import jax.numpy as jnp
from jax import lax
from jax.experimental import pallas as pl
from jax.experimental.pallas import tpu as pltpu


def _round_up(x, m):
    return (x + m - 1) // m * m


def _bi_mha_kernel(v_ref, l_ref,
                   wq_ref, bq_ref, wk_ref, bk_ref,
                   wvv_ref, bvv_ref, wvl_ref, bvl_ref,
                   wov_ref, bov_ref, wol_ref, bol_ref,
                   out_v_ref, out_l_ref,
                   *, num_heads, head_dim):
    f32, bf16 = jnp.float32, jnp.bfloat16

    v = v_ref[...]                           # (Tv, Dv) bf16
    l = l_ref[...]                           # (Tl, Dl) bf16

    # Full-embed, lane-dense projections (softmax scale folded into wq/bq).
    q = jnp.dot(v, wq_ref[...], preferred_element_type=f32) + bq_ref[...]
    k = jnp.dot(l, wk_ref[...], preferred_element_type=f32) + bk_ref[...]
    vv = jnp.dot(v, wvv_ref[...], preferred_element_type=f32) + bvv_ref[...]
    vl = jnp.dot(l, wvl_ref[...], preferred_element_type=f32) + bvl_ref[...]

    q16, k16 = q.astype(bf16), k.astype(bf16)
    vv16, vl16 = vv.astype(bf16), vl.astype(bf16)

    hd = head_dim
    ov_parts, ol_parts = [], []
    # TODO(synk): switch to lax.fori_loop / a grid axis for very large head
    #             counts or sequence lengths so live ranges stay bounded.
    for h in range(num_heads):
        sl = slice(h * hd, (h + 1) * hd)
        q_h, k_h = q16[:, sl], k16[:, sl]
        vv_h, vl_h = vv16[:, sl], vl16[:, sl]

        # Scores for this head: (Tv, Tl), f32 accumulation on the MXU.
        s = lax.dot_general(q_h, k_h, (((1,), (1,)), ((), ())),
                            preferred_element_type=f32)

        # Single shared exp for both softmax branches (scalar max is constant
        # across both rows and columns -> both softmaxes are exact).
        m = jnp.max(s)
        e = jnp.exp(s - m)                                   # (Tv, Tl) f32
        e16 = e.astype(bf16)

        # Vision branch: softmax over the text axis (lane reduction).
        # Normalization deferred past the PV matmul.
        inv_row = 1.0 / jnp.sum(e, axis=1, keepdims=True)    # (Tv, 1)
        ov_parts.append(
            jnp.dot(e16, vl_h, preferred_element_type=f32) * inv_row)

        # Language branch: one explicit transpose, then a lane reduction and a
        # standard-orientation (Tl, Tv) x (Tv, hd) matmul.
        et = jnp.transpose(e)                                # (Tl, Tv) f32
        inv_col = 1.0 / jnp.sum(et, axis=1, keepdims=True)   # (Tl, 1)
        ol_parts.append(
            jnp.dot(et.astype(bf16), vv_h, preferred_element_type=f32) * inv_col)

    # TODO(synk): attention_mask_v / attention_mask_l are None in this setup
    #             and dropout is identity in eval mode, so neither is applied.

    # Deferred output projection: one full-depth (K = E) matmul per branch
    # instead of num_heads accumulating K = head_dim matmuls.
    ov_all = jnp.concatenate(ov_parts, axis=1).astype(bf16)  # (Tv, E)
    ol_all = jnp.concatenate(ol_parts, axis=1).astype(bf16)  # (Tl, E)

    out_v_ref[...] = (jnp.dot(ov_all, wov_ref[...], preferred_element_type=f32)
                      + bov_ref[...]).astype(out_v_ref.dtype)
    out_l_ref[...] = (jnp.dot(ol_all, wol_ref[...], preferred_element_type=f32)
                      + bol_ref[...]).astype(out_l_ref.dtype)


def _vmem_limit_bytes():
    # Per-generation VMEM budget with ~25% headroom (v7x only has 64 MiB).
    try:
        return int(pltpu.get_tpu_info().vmem_capacity_bytes * 3 // 4)
    except Exception:
        return None


def bi_multi_head_attention(v, l, params, num_heads):
    B, Tv, Dv = v.shape
    _, Tl, Dl = l.shape
    E = params['wq'].shape[1]
    hd = E // num_heads
    assert hd * num_heads == E
    scale = hd ** (-0.5)
    bf16, f32 = jnp.bfloat16, jnp.float32

    # Lane-dense output feature dims (multiple of 128); sliced off afterwards.
    Dv_p = _round_up(Dv, 128)
    Dl_p = _round_up(Dl, 128)

    def pad_cols(x, d, d_p):
        return x if d == d_p else jnp.pad(x, ((0, 0), (0, d_p - d)))

    args = (
        v.astype(bf16), l.astype(bf16),
        # scale folded into the query projection on the host (one-time cost)
        (params['wq'] * scale).astype(bf16), (params['bq'] * scale).astype(f32),
        params['wk'].astype(bf16), params['bk'].astype(f32),
        params['wvv'].astype(bf16), params['bvv'].astype(f32),
        params['wvl'].astype(bf16), params['bvl'].astype(f32),
        pad_cols(params['wov'], Dv, Dv_p).astype(bf16),
        pad_cols(params['bov'].astype(f32), Dv, Dv_p),
        pad_cols(params['wol'], Dl, Dl_p).astype(bf16),
        pad_cols(params['bol'].astype(f32), Dl, Dl_p),
    )

    const2d = lambda b: (0, 0)   # constant block index -> fetched once, resident
    in_specs = [
        pl.BlockSpec((None, Tv, Dv), lambda b: (b, 0, 0)),   # v
        pl.BlockSpec((None, Tl, Dl), lambda b: (b, 0, 0)),   # l
        pl.BlockSpec((Dv, E), const2d), pl.BlockSpec((1, E), const2d),      # wq, bq
        pl.BlockSpec((Dl, E), const2d), pl.BlockSpec((1, E), const2d),      # wk, bk
        pl.BlockSpec((Dv, E), const2d), pl.BlockSpec((1, E), const2d),      # wvv, bvv
        pl.BlockSpec((Dl, E), const2d), pl.BlockSpec((1, E), const2d),      # wvl, bvl
        pl.BlockSpec((E, Dv_p), const2d), pl.BlockSpec((1, Dv_p), const2d),  # wov, bov
        pl.BlockSpec((E, Dl_p), const2d), pl.BlockSpec((1, Dl_p), const2d),  # wol, bol
    ]
    out_specs = (
        pl.BlockSpec((None, Tv, Dv_p), lambda b: (b, 0, 0)),
        pl.BlockSpec((None, Tl, Dl_p), lambda b: (b, 0, 0)),
    )
    out_shapes = (jax.ShapeDtypeStruct((B, Tv, Dv_p), v.dtype),
                  jax.ShapeDtypeStruct((B, Tl, Dl_p), l.dtype))

    cp_kwargs = dict(dimension_semantics=("parallel",))
    vmem_limit = _vmem_limit_bytes()
    if vmem_limit is not None:
        cp_kwargs["vmem_limit_bytes"] = vmem_limit

    kernel = functools.partial(_bi_mha_kernel, num_heads=num_heads, head_dim=hd)
    out_v, out_l = pl.pallas_call(
        kernel,
        out_shape=out_shapes,
        grid_spec=pltpu.PrefetchScalarGridSpec(
            num_scalar_prefetch=0,
            grid=(B,),
            in_specs=in_specs,
            out_specs=out_specs),
        compiler_params=pltpu.CompilerParams(**cp_kwargs),
    )(*args)
    return out_v[:, :, :Dv], out_l[:, :, :Dl]


def reference(v, l, params, num_heads):
    """Pure-JAX f32 mirror of the PyTorch forward (eval mode, no masks)."""
    B, Tv, Dv = v.shape
    _, Tl, Dl = l.shape
    E = params['wq'].shape[1]
    hd = E // num_heads
    scale = hd ** (-0.5)

    def lin(x, w, b):
        return x @ w + b[0]

    q = lin(v, params['wq'], params['bq']) * scale
    k = lin(l, params['wk'], params['bk'])
    vv = lin(v, params['wvv'], params['bvv'])
    vl = lin(l, params['wvl'], params['bvl'])

    def shape_heads(x, T):
        return x.reshape(B, T, num_heads, hd).transpose(0, 2, 1, 3) \
                .reshape(B * num_heads, T, hd)

    q = shape_heads(q, Tv)
    k = shape_heads(k, Tl)
    vv = shape_heads(vv, Tv)
    vl = shape_heads(vl, Tl)

    aw = jnp.einsum('bqd,bkd->bqk', q, k)
    aw = aw - aw.max()
    aw = jnp.clip(aw, -50000.0, 50000.0)

    awT = aw.transpose(0, 2, 1)
    aw_l = awT - awT.max(axis=-1, keepdims=True)
    aw_l = jnp.clip(aw_l, -50000.0, 50000.0)
    p_l = jax.nn.softmax(aw_l, axis=-1)
    p_v = jax.nn.softmax(aw, axis=-1)

    ov = p_v @ vl                                    # (B*H, Tv, hd)
    ol = p_l @ vv                                    # (B*H, Tl, hd)
    ov = ov.reshape(B, num_heads, Tv, hd).transpose(0, 2, 1, 3).reshape(B, Tv, E)
    ol = ol.reshape(B, num_heads, Tl, hd).transpose(0, 2, 1, 3).reshape(B, Tl, E)
    out_v = ov @ params['wov'] + params['bov'][0]
    out_l = ol @ params['wol'] + params['bol'][0]
    return out_v, out_l


def init_params(key, v_dim, l_dim, embed_dim):
    ks = jax.random.split(key, 12)
    std = 0.02
    n = lambda k, s: jax.random.normal(k, s, jnp.float32) * std
    return {
        'wq':  n(ks[0],  (v_dim, embed_dim)),  'bq':  n(ks[1],  (1, embed_dim)),
        'wk':  n(ks[2],  (l_dim, embed_dim)),  'bk':  n(ks[3],  (1, embed_dim)),
        'wvv': n(ks[4],  (v_dim, embed_dim)),  'bvv': n(ks[5],  (1, embed_dim)),
        'wvl': n(ks[6],  (l_dim, embed_dim)),  'bvl': n(ks[7],  (1, embed_dim)),
        'wov': n(ks[8],  (embed_dim, v_dim)),  'bov': n(ks[9],  (1, v_dim)),
        'wol': n(ks[10], (embed_dim, l_dim)),
        # _reset_parameters(): out_l_proj.bias filled with 0.
        'bol': jnp.zeros((1, l_dim), jnp.float32),
    }


if __name__ == "__main__":
    # Small shapes: bsz=2, n_img=16, n_text=8, v_dim=l_dim=embed_dim=32, heads=4.
    B, Tv, Tl = 2, 16, 8
    V_DIM, L_DIM, EMBED_DIM, NUM_HEADS = 32, 32, 32, 4

    key = jax.random.PRNGKey(0)
    kv, kl, kp = jax.random.split(key, 3)
    v = jax.random.normal(kv, (B, Tv, V_DIM), jnp.float32)
    l = jax.random.normal(kl, (B, Tl, L_DIM), jnp.float32)
    params = init_params(kp, V_DIM, L_DIM, EMBED_DIM)

    out_v, out_l = bi_multi_head_attention(v, l, params, NUM_HEADS)
    jax.block_until_ready((out_v, out_l))

    ref_v, ref_l = reference(v, l, params, NUM_HEADS)
    assert out_v.shape == (B, Tv, V_DIM) and out_l.shape == (B, Tl, L_DIM)
    assert jnp.allclose(out_v, ref_v, atol=2e-3, rtol=2e-2), "out_v mismatch"
    assert jnp.allclose(out_l, ref_l, atol=2e-3, rtol=2e-2), "out_l mismatch"

    print("KERNEL_OK")
</pallas_src>

<mosaic_0001>
module attributes {stable_mosaic.version = 11 : i64} {
  func.func @_bi_mha_kernel(%arg0: i32, %arg1: memref<1x16x32xbf16, #tpu.memory_space<vmem>>, %arg2: memref<1x8x32xbf16, #tpu.memory_space<vmem>>, %arg3: memref<32x32xbf16, #tpu.memory_space<vmem>>, %arg4: memref<1x32xf32, #tpu.memory_space<vmem>>, %arg5: memref<32x32xbf16, #tpu.memory_space<vmem>>, %arg6: memref<1x32xf32, #tpu.memory_space<vmem>>, %arg7: memref<32x32xbf16, #tpu.memory_space<vmem>>, %arg8: memref<1x32xf32, #tpu.memory_space<vmem>>, %arg9: memref<32x32xbf16, #tpu.memory_space<vmem>>, %arg10: memref<1x32xf32, #tpu.memory_space<vmem>>, %arg11: memref<32x128xbf16, #tpu.memory_space<vmem>>, %arg12: memref<1x128xf32, #tpu.memory_space<vmem>>, %arg13: memref<32x128xbf16, #tpu.memory_space<vmem>>, %arg14: memref<1x128xf32, #tpu.memory_space<vmem>>, %arg15: memref<1x16x128xf32, #tpu.memory_space<vmem>>, %arg16: memref<1x8x128xf32, #tpu.memory_space<vmem>>) attributes {dimension_semantics = [#tpu.dimension_semantics<parallel>], iteration_bounds = array<i64: 2>, scalar_prefetch = 0 : i64, scratch_operands = 0 : i64, tpu.core_type = #tpu.core_type<tc>, window_params = [{transform_indices = @transform_0, window_bounds = array<i64: 1, 16, 32>}, {transform_indices = @transform_1, window_bounds = array<i64: 1, 8, 32>}, {pipeline_mode = #tpu.pipeline_mode<synchronous>, transform_indices = @transform_2, window_bounds = array<i64: 32, 32>}, {pipeline_mode = #tpu.pipeline_mode<synchronous>, transform_indices = @transform_3, window_bounds = array<i64: 1, 32>}, {pipeline_mode = #tpu.pipeline_mode<synchronous>, transform_indices = @transform_4, window_bounds = array<i64: 32, 32>}, {pipeline_mode = #tpu.pipeline_mode<synchronous>, transform_indices = @transform_5, window_bounds = array<i64: 1, 32>}, {pipeline_mode = #tpu.pipeline_mode<synchronous>, transform_indices = @transform_6, window_bounds = array<i64: 32, 32>}, {pipeline_mode = #tpu.pipeline_mode<synchronous>, transform_indices = @transform_7, window_bounds = array<i64: 1, 32>}, {pipeline_mode = #tpu.pipeline_mode<synchronous>, transform_indices = @transform_8, window_bounds = array<i64: 32, 32>}, {pipeline_mode = #tpu.pipeline_mode<synchronous>, transform_indices = @transform_9, window_bounds = array<i64: 1, 32>}, {pipeline_mode = #tpu.pipeline_mode<synchronous>, transform_indices = @transform_10, window_bounds = array<i64: 32, 128>}, {pipeline_mode = #tpu.pipeline_mode<synchronous>, transform_indices = @transform_11, window_bounds = array<i64: 1, 128>}, {pipeline_mode = #tpu.pipeline_mode<synchronous>, transform_indices = @transform_12, window_bounds = array<i64: 32, 128>}, {pipeline_mode = #tpu.pipeline_mode<synchronous>, transform_indices = @transform_13, window_bounds = array<i64: 1, 128>}, {transform_indices = @transform_14, window_bounds = array<i64: 1, 16, 128>}, {transform_indices = @transform_15, window_bounds = array<i64: 1, 8, 128>}]} {
    %c0 = arith.constant 0 : index
    %c0_0 = arith.constant 0 : index
    %c0_1 = arith.constant 0 : index
    %0 = vector.load %arg1[%c0, %c0_0, %c0_1] : memref<1x16x32xbf16, #tpu.memory_space<vmem>>, vector<1x16x32xbf16>
    %1 = vector.shape_cast %0 : vector<1x16x32xbf16> to vector<16x32xbf16>
    %c0_2 = arith.constant 0 : index
    %c0_3 = arith.constant 0 : index
    %c0_4 = arith.constant 0 : index
    %2 = vector.load %arg2[%c0_2, %c0_3, %c0_4] : memref<1x8x32xbf16, #tpu.memory_space<vmem>>, vector<1x8x32xbf16>
    %3 = vector.shape_cast %2 : vector<1x8x32xbf16> to vector<8x32xbf16>
    %c0_5 = arith.constant 0 : index
    %c0_6 = arith.constant 0 : index
    %4 = vector.load %arg3[%c0_5, %c0_6] : memref<32x32xbf16, #tpu.memory_space<vmem>>, vector<32x32xbf16>
    %cst = arith.constant dense<0.000000e+00> : vector<16x32xf32>
    %5 = tpu.matmul %1, %4, %cst {dimension_numbers = #tpu.dot_dimension_numbers<[1], [0], [0], [1], [0, 0, 1, 1], [], []>} : vector<16x32xbf16>, vector<32x32xbf16>, vector<16x32xf32> -> vector<16x32xf32>
    %c0_7 = arith.constant 0 : index
    %c0_8 = arith.constant 0 : index
    %6 = vector.load %arg4[%c0_7, %c0_8] : memref<1x32xf32, #tpu.memory_space<vmem>>, vector<1x32xf32>
    %7 = vector.broadcast %6 : vector<1x32xf32> to vector<16x32xf32>
    %8 = arith.addf %5, %7 : vector<16x32xf32>
    %c0_9 = arith.constant 0 : index
    %c0_10 = arith.constant 0 : index
    %9 = vector.load %arg5[%c0_9, %c0_10] : memref<32x32xbf16, #tpu.memory_space<vmem>>, vector<32x32xbf16>
    %cst_11 = arith.constant dense<0.000000e+00> : vector<8x32xf32>
    %10 = tpu.matmul %3, %9, %cst_11 {dimension_numbers = #tpu.dot_dimension_numbers<[1], [0], [0], [1], [0, 0, 1, 1], [], []>} : vector<8x32xbf16>, vector<32x32xbf16>, vector<8x32xf32> -> vector<8x32xf32>
    %c0_12 = arith.constant 0 : index
    %c0_13 = arith.constant 0 : index
    %11 = vector.load %arg6[%c0_12, %c0_13] : memref<1x32xf32, #tpu.memory_space<vmem>>, vector<1x32xf32>
    %12 = vector.broadcast %11 : vector<1x32xf32> to vector<8x32xf32>
    %13 = arith.addf %10, %12 : vector<8x32xf32>
    %c0_14 = arith.constant 0 : index
    %c0_15 = arith.constant 0 : index
    %14 = vector.load %arg7[%c0_14, %c0_15] : memref<32x32xbf16, #tpu.memory_space<vmem>>, vector<32x32xbf16>
    %cst_16 = arith.constant dense<0.000000e+00> : vector<16x32xf32>
    %15 = tpu.matmul %1, %14, %cst_16 {dimension_numbers = #tpu.dot_dimension_numbers<[1], [0], [0], [1], [0, 0, 1, 1], [], []>} : vector<16x32xbf16>, vector<32x32xbf16>, vector<16x32xf32> -> vector<16x32xf32>
    %c0_17 = arith.constant 0 : index
    %c0_18 = arith.constant 0 : index
    %16 = vector.load %arg8[%c0_17, %c0_18] : memref<1x32xf32, #tpu.memory_space<vmem>>, vector<1x32xf32>
    %17 = vector.broadcast %16 : vector<1x32xf32> to vector<16x32xf32>
    %18 = arith.addf %15, %17 : vector<16x32xf32>
    %c0_19 = arith.constant 0 : index
    %c0_20 = arith.constant 0 : index
    %19 = vector.load %arg9[%c0_19, %c0_20] : memref<32x32xbf16, #tpu.memory_space<vmem>>, vector<32x32xbf16>
    %cst_21 = arith.constant dense<0.000000e+00> : vector<8x32xf32>
    %20 = tpu.matmul %3, %19, %cst_21 {dimension_numbers = #tpu.dot_dimension_numbers<[1], [0], [0], [1], [0, 0, 1, 1], [], []>} : vector<8x32xbf16>, vector<32x32xbf16>, vector<8x32xf32> -> vector<8x32xf32>
    %c0_22 = arith.constant 0 : index
    %c0_23 = arith.constant 0 : index
    %21 = vector.load %arg10[%c0_22, %c0_23] : memref<1x32xf32, #tpu.memory_space<vmem>>, vector<1x32xf32>
    %22 = vector.broadcast %21 : vector<1x32xf32> to vector<8x32xf32>
    %23 = arith.addf %20, %22 : vector<8x32xf32>
    %24 = arith.truncf %8 : vector<16x32xf32> to vector<16x32xbf16>
    %25 = arith.truncf %13 : vector<8x32xf32> to vector<8x32xbf16>
    %26 = arith.truncf %18 : vector<16x32xf32> to vector<16x32xbf16>
    %27 = arith.truncf %23 : vector<8x32xf32> to vector<8x32xbf16>
    %28 = vector.extract_strided_slice %24 {offsets = [0, 0], sizes = [16, 8], strides = [1, 1]} : vector<16x32xbf16> to vector<16x8xbf16>
    %29 = vector.extract_strided_slice %25 {offsets = [0, 0], sizes = [8, 8], strides = [1, 1]} : vector<8x32xbf16> to vector<8x8xbf16>
    %30 = vector.extract_strided_slice %26 {offsets = [0, 0], sizes = [16, 8], strides = [1, 1]} : vector<16x32xbf16> to vector<16x8xbf16>
    %31 = vector.extract_strided_slice %27 {offsets = [0, 0], sizes = [8, 8], strides = [1, 1]} : vector<8x32xbf16> to vector<8x8xbf16>
    %cst_24 = arith.constant dense<0.000000e+00> : vector<16x8xf32>
    %32 = tpu.matmul %28, %29, %cst_24 {dimension_numbers = #tpu.dot_dimension_numbers<[1], [1], [0], [0], [0, 0, 1, 0], [], []>} : vector<16x8xbf16>, vector<8x8xbf16>, vector<16x8xf32> -> vector<16x8xf32>
    %33 = vector.shape_cast %32 : vector<16x8xf32> to vector<1x16x8xf32>
    %cst_25 = arith.constant dense<0xFF800000> : vector<1xf32>
    %34 = vector.multi_reduction <maximumf>, %33, %cst_25 [1, 2] : vector<1x16x8xf32> to vector<1xf32>
    %35 = vector.shape_cast %34 : vector<1xf32> to vector<1x1x1xf32>
    %36 = vector.extract %35[0, 0, 0] : f32 from vector<1x1x1xf32>
    %37 = vector.broadcast %36 : f32 to vector<16x8xf32>
    %38 = arith.subf %32, %37 : vector<16x8xf32>
    %39 = math.exp %38 : vector<16x8xf32>
    %40 = arith.truncf %39 : vector<16x8xf32> to vector<16x8xbf16>
    %cst_26 = arith.constant dense<0.000000e+00> : vector<16xf32>
    %41 = vector.multi_reduction <add>, %39, %cst_26 [1] : vector<16x8xf32> to vector<16xf32>
    %42 = vector.shape_cast %41 : vector<16xf32> to vector<16x1xf32>
    %cst_27 = arith.constant 1.000000e+00 : f32
    %43 = vector.broadcast %cst_27 : f32 to vector<16x1xf32>
    %44 = arith.divf %43, %42 : vector<16x1xf32>
    %cst_28 = arith.constant dense<0.000000e+00> : vector<16x8xf32>
    %45 = tpu.matmul %40, %31, %cst_28 {dimension_numbers = #tpu.dot_dimension_numbers<[1], [0], [0], [1], [0, 0, 1, 1], [], []>} : vector<16x8xbf16>, vector<8x8xbf16>, vector<16x8xf32> -> vector<16x8xf32>
    %46 = vector.broadcast %44 : vector<16x1xf32> to vector<16x8xf32>
    %47 = arith.mulf %45, %46 : vector<16x8xf32>
    %48 = tpu.transpose %39, [1, 0] : vector<16x8xf32> -> vector<8x16xf32>
    %cst_29 = arith.constant dense<0.000000e+00> : vector<8xf32>
    %49 = vector.multi_reduction <add>, %48, %cst_29 [1] : vector<8x16xf32> to vector<8xf32>
    %50 = vector.shape_cast %49 : vector<8xf32> to vector<8x1xf32>
    %cst_30 = arith.constant 1.000000e+00 : f32
    %51 = vector.broadcast %cst_30 : f32 to vector<8x1xf32>
    %52 = arith.divf %51, %50 : vector<8x1xf32>
    %53 = arith.truncf %48 : vector<8x16xf32> to vector<8x16xbf16>
    %cst_31 = arith.constant dense<0.000000e+00> : vector<8x8xf32>
    %54 = tpu.matmul %53, %30, %cst_31 {dimension_numbers = #tpu.dot_dimension_numbers<[1], [0], [0], [1], [0, 0, 1, 1], [], []>} : vector<8x16xbf16>, vector<16x8xbf16>, vector<8x8xf32> -> vector<8x8xf32>
    %55 = vector.broadcast %52 : vector<8x1xf32> to vector<8x8xf32>
    %56 = arith.mulf %54, %55 : vector<8x8xf32>
    %57 = vector.extract_strided_slice %24 {offsets = [0, 8], sizes = [16, 8], strides = [1, 1]} : vector<16x32xbf16> to vector<16x8xbf16>
    %58 = vector.extract_strided_slice %25 {offsets = [0, 8], sizes = [8, 8], strides = [1, 1]} : vector<8x32xbf16> to vector<8x8xbf16>
    %59 = vector.extract_strided_slice %26 {offsets = [0, 8], sizes = [16, 8], strides = [1, 1]} : vector<16x32xbf16> to vector<16x8xbf16>
    %60 = vector.extract_strided_slice %27 {offsets = [0, 8], sizes = [8, 8], strides = [1, 1]} : vector<8x32xbf16> to vector<8x8xbf16>
    %cst_32 = arith.constant dense<0.000000e+00> : vector<16x8xf32>
    %61 = tpu.matmul %57, %58, %cst_32 {dimension_numbers = #tpu.dot_dimension_numbers<[1], [1], [0], [0], [0, 0, 1, 0], [], []>} : vector<16x8xbf16>, vector<8x8xbf16>, vector<16x8xf32> -> vector<16x8xf32>
    %62 = vector.shape_cast %61 : vector<16x8xf32> to vector<1x16x8xf32>
    %cst_33 = arith.constant dense<0xFF800000> : vector<1xf32>
    %63 = vector.multi_reduction <maximumf>, %62, %cst_33 [1, 2] : vector<1x16x8xf32> to vector<1xf32>
    %64 = vector.shape_cast %63 : vector<1xf32> to vector<1x1x1xf32>
    %65 = vector.extract %64[0, 0, 0] : f32 from vector<1x1x1xf32>
    %66 = vector.broadcast %65 : f32 to vector<16x8xf32>
    %67 = arith.subf %61, %66 : vector<16x8xf32>
    %68 = math.exp %67 : vector<16x8xf32>
    %69 = arith.truncf %68 : vector<16x8xf32> to vector<16x8xbf16>
    %cst_34 = arith.constant dense<0.000000e+00> : vector<16xf32>
    %70 = vector.multi_reduction <add>, %68, %cst_34 [1] : vector<16x8xf32> to vector<16xf32>
    %71 = vector.shape_cast %70 : vector<16xf32> to vector<16x1xf32>
    %cst_35 = arith.constant 1.000000e+00 : f32
    %72 = vector.broadcast %cst_35 : f32 to vector<16x1xf32>
    %73 = arith.divf %72, %71 : vector<16x1xf32>
    %cst_36 = arith.constant dense<0.000000e+00> : vector<16x8xf32>
    %74 = tpu.matmul %69, %60, %cst_36 {dimension_numbers = #tpu.dot_dimension_numbers<[1], [0], [0], [1], [0, 0, 1, 1], [], []>} : vector<16x8xbf16>, vector<8x8xbf16>, vector<16x8xf32> -> vector<16x8xf32>
    %75 = vector.broadcast %73 : vector<16x1xf32> to vector<16x8xf32>
    %76 = arith.mulf %74, %75 : vector<16x8xf32>
    %77 = tpu.transpose %68, [1, 0] : vector<16x8xf32> -> vector<8x16xf32>
    %cst_37 = arith.constant dense<0.000000e+00> : vector<8xf32>
    %78 = vector.multi_reduction <add>, %77, %cst_37 [1] : vector<8x16xf32> to vector<8xf32>
    %79 = vector.shape_cast %78 : vector<8xf32> to vector<8x1xf32>
    %cst_38 = arith.constant 1.000000e+00 : f32
    %80 = vector.broadcast %cst_38 : f32 to vector<8x1xf32>
    %81 = arith.divf %80, %79 : vector<8x1xf32>
    %82 = arith.truncf %77 : vector<8x16xf32> to vector<8x16xbf16>
    %cst_39 = arith.constant dense<0.000000e+00> : vector<8x8xf32>
    %83 = tpu.matmul %82, %59, %cst_39 {dimension_numbers = #tpu.dot_dimension_numbers<[1], [0], [0], [1], [0, 0, 1, 1], [], []>} : vector<8x16xbf16>, vector<16x8xbf16>, vector<8x8xf32> -> vector<8x8xf32>
    %84 = vector.broadcast %81 : vector<8x1xf32> to vector<8x8xf32>
    %85 = arith.mulf %83, %84 : vector<8x8xf32>
    %86 = vector.extract_strided_slice %24 {offsets = [0, 16], sizes = [16, 8], strides = [1, 1]} : vector<16x32xbf16> to vector<16x8xbf16>
    %87 = vector.extract_strided_slice %25 {offsets = [0, 16], sizes = [8, 8], strides = [1, 1]} : vector<8x32xbf16> to vector<8x8xbf16>
    %88 = vector.extract_strided_slice %26 {offsets = [0, 16], sizes = [16, 8], strides = [1, 1]} : vector<16x32xbf16> to vector<16x8xbf16>
    %89 = vector.extract_strided_slice %27 {offsets = [0, 16], sizes = [8, 8], strides = [1, 1]} : vector<8x32xbf16> to vector<8x8xbf16>
    %cst_40 = arith.constant dense<0.000000e+00> : vector<16x8xf32>
    %90 = tpu.matmul %86, %87, %cst_40 {dimension_numbers = #tpu.dot_dimension_numbers<[1], [1], [0], [0], [0, 0, 1, 0], [], []>} : vector<16x8xbf16>, vector<8x8xbf16>, vector<16x8xf32> -> vector<16x8xf32>
    %91 = vector.shape_cast %90 : vector<16x8xf32> to vector<1x16x8xf32>
    %cst_41 = arith.constant dense<0xFF800000> : vector<1xf32>
    %92 = vector.multi_reduction <maximumf>, %91, %cst_41 [1, 2] : vector<1x16x8xf32> to vector<1xf32>
    %93 = vector.shape_cast %92 : vector<1xf32> to vector<1x1x1xf32>
    %94 = vector.extract %93[0, 0, 0] : f32 from vector<1x1x1xf32>
    %95 = vector.broadcast %94 : f32 to vector<16x8xf32>
    %96 = arith.subf %90, %95 : vector<16x8xf32>
    %97 = math.exp %96 : vector<16x8xf32>
    %98 = arith.truncf %97 : vector<16x8xf32> to vector<16x8xbf16>
    %cst_42 = arith.constant dense<0.000000e+00> : vector<16xf32>
    %99 = vector.multi_reduction <add>, %97, %cst_42 [1] : vector<16x8xf32> to vector<16xf32>
    %100 = vector.shape_cast %99 : vector<16xf32> to vector<16x1xf32>
    %cst_43 = arith.constant 1.000000e+00 : f32
    %101 = vector.broadcast %cst_43 : f32 to vector<16x1xf32>
    %102 = arith.divf %101, %100 : vector<16x1xf32>
    %cst_44 = arith.constant dense<0.000000e+00> : vector<16x8xf32>
    %103 = tpu.matmul %98, %89, %cst_44 {dimension_numbers = #tpu.dot_dimension_numbers<[1], [0], [0], [1], [0, 0, 1, 1], [], []>} : vector<16x8xbf16>, vector<8x8xbf16>, vector<16x8xf32> -> vector<16x8xf32>
    %104 = vector.broadcast %102 : vector<16x1xf32> to vector<16x8xf32>
    %105 = arith.mulf %103, %104 : vector<16x8xf32>
    %106 = tpu.transpose %97, [1, 0] : vector<16x8xf32> -> vector<8x16xf32>
    %cst_45 = arith.constant dense<0.000000e+00> : vector<8xf32>
    %107 = vector.multi_reduction <add>, %106, %cst_45 [1] : vector<8x16xf32> to vector<8xf32>
    %108 = vector.shape_cast %107 : vector<8xf32> to vector<8x1xf32>
    %cst_46 = arith.constant 1.000000e+00 : f32
    %109 = vector.broadcast %cst_46 : f32 to vector<8x1xf32>
    %110 = arith.divf %109, %108 : vector<8x1xf32>
    %111 = arith.truncf %106 : vector<8x16xf32> to vector<8x16xbf16>
    %cst_47 = arith.constant dense<0.000000e+00> : vector<8x8xf32>
    %112 = tpu.matmul %111, %88, %cst_47 {dimension_numbers = #tpu.dot_dimension_numbers<[1], [0], [0], [1], [0, 0, 1, 1], [], []>} : vector<8x16xbf16>, vector<16x8xbf16>, vector<8x8xf32> -> vector<8x8xf32>
    %113 = vector.broadcast %110 : vector<8x1xf32> to vector<8x8xf32>
    %114 = arith.mulf %112, %113 : vector<8x8xf32>
    %115 = vector.extract_strided_slice %24 {offsets = [0, 24], sizes = [16, 8], strides = [1, 1]} : vector<16x32xbf16> to vector<16x8xbf16>
    %116 = vector.extract_strided_slice %25 {offsets = [0, 24], sizes = [8, 8], strides = [1, 1]} : vector<8x32xbf16> to vector<8x8xbf16>
    %117 = vector.extract_strided_slice %26 {offsets = [0, 24], sizes = [16, 8], strides = [1, 1]} : vector<16x32xbf16> to vector<16x8xbf16>
    %118 = vector.extract_strided_slice %27 {offsets = [0, 24], sizes = [8, 8], strides = [1, 1]} : vector<8x32xbf16> to vector<8x8xbf16>
    %cst_48 = arith.constant dense<0.000000e+00> : vector<16x8xf32>
    %119 = tpu.matmul %115, %116, %cst_48 {dimension_numbers = #tpu.dot_dimension_numbers<[1], [1], [0], [0], [0, 0, 1, 0], [], []>} : vector<16x8xbf16>, vector<8x8xbf16>, vector<16x8xf32> -> vector<16x8xf32>
    %120 = vector.shape_cast %119 : vector<16x8xf32> to vector<1x16x8xf32>
    %cst_49 = arith.constant dense<0xFF800000> : vector<1xf32>
    %121 = vector.multi_reduction <maximumf>, %120, %cst_49 [1, 2] : vector<1x16x8xf32> to vector<1xf32>
    %122 = vector.shape_cast %121 : vector<1xf32> to vector<1x1x1xf32>
    %123 = vector.extract %122[0, 0, 0] : f32 from vector<1x1x1xf32>
    %124 = vector.broadcast %123 : f32 to vector<16x8xf32>
    %125 = arith.subf %119, %124 : vector<16x8xf32>
    %126 = math.exp %125 : vector<16x8xf32>
    %127 = arith.truncf %126 : vector<16x8xf32> to vector<16x8xbf16>
    %cst_50 = arith.constant dense<0.000000e+00> : vector<16xf32>
    %128 = vector.multi_reduction <add>, %126, %cst_50 [1] : vector<16x8xf32> to vector<16xf32>
    %129 = vector.shape_cast %128 : vector<16xf32> to vector<16x1xf32>
    %cst_51 = arith.constant 1.000000e+00 : f32
    %130 = vector.broadcast %cst_51 : f32 to vector<16x1xf32>
    %131 = arith.divf %130, %129 : vector<16x1xf32>
    %cst_52 = arith.constant dense<0.000000e+00> : vector<16x8xf32>
    %132 = tpu.matmul %127, %118, %cst_52 {dimension_numbers = #tpu.dot_dimension_numbers<[1], [0], [0], [1], [0, 0, 1, 1], [], []>} : vector<16x8xbf16>, vector<8x8xbf16>, vector<16x8xf32> -> vector<16x8xf32>
    %133 = vector.broadcast %131 : vector<16x1xf32> to vector<16x8xf32>
    %134 = arith.mulf %132, %133 : vector<16x8xf32>
    %135 = tpu.transpose %126, [1, 0] : vector<16x8xf32> -> vector<8x16xf32>
    %cst_53 = arith.constant dense<0.000000e+00> : vector<8xf32>
    %136 = vector.multi_reduction <add>, %135, %cst_53 [1] : vector<8x16xf32> to vector<8xf32>
    %137 = vector.shape_cast %136 : vector<8xf32> to vector<8x1xf32>
    %cst_54 = arith.constant 1.000000e+00 : f32
    %138 = vector.broadcast %cst_54 : f32 to vector<8x1xf32>
    %139 = arith.divf %138, %137 : vector<8x1xf32>
    %140 = arith.truncf %135 : vector<8x16xf32> to vector<8x16xbf16>
    %cst_55 = arith.constant dense<0.000000e+00> : vector<8x8xf32>
    %141 = tpu.matmul %140, %117, %cst_55 {dimension_numbers = #tpu.dot_dimension_numbers<[1], [0], [0], [1], [0, 0, 1, 1], [], []>} : vector<8x16xbf16>, vector<16x8xbf16>, vector<8x8xf32> -> vector<8x8xf32>
    %142 = vector.broadcast %139 : vector<8x1xf32> to vector<8x8xf32>
    %143 = arith.mulf %141, %142 : vector<8x8xf32>
    %144 = tpu.concatenate %47, %76, %105, %134 in 1 : vector<16x8xf32>, vector<16x8xf32>, vector<16x8xf32>, vector<16x8xf32> -> vector<16x32xf32>
    %145 = arith.truncf %144 : vector<16x32xf32> to vector<16x32xbf16>
    %146 = tpu.concatenate %56, %85, %114, %143 in 1 : vector<8x8xf32>, vector<8x8xf32>, vector<8x8xf32>, vector<8x8xf32> -> vector<8x32xf32>
    %147 = arith.truncf %146 : vector<8x32xf32> to vector<8x32xbf16>
    %c0_56 = arith.constant 0 : index
    %c0_57 = arith.constant 0 : index
    %148 = vector.load %arg11[%c0_56, %c0_57] : memref<32x128xbf16, #tpu.memory_space<vmem>>, vector<32x128xbf16>
    %cst_58 = arith.constant dense<0.000000e+00> : vector<16x128xf32>
    %149 = tpu.matmul %145, %148, %cst_58 {dimension_numbers = #tpu.dot_dimension_numbers<[1], [0], [0], [1], [0, 0, 1, 1], [], []>} : vector<16x32xbf16>, vector<32x128xbf16>, vector<16x128xf32> -> vector<16x128xf32>
    %c0_59 = arith.constant 0 : index
    %c0_60 = arith.constant 0 : index
    %150 = vector.load %arg12[%c0_59, %c0_60] : memref<1x128xf32, #tpu.memory_space<vmem>>, vector<1x128xf32>
    %151 = vector.broadcast %150 : vector<1x128xf32> to vector<16x128xf32>
    %152 = arith.addf %149, %151 : vector<16x128xf32>
    %c0_61 = arith.constant 0 : index
    %c0_62 = arith.constant 0 : index
    %c0_63 = arith.constant 0 : index
    %153 = vector.load %arg15[%c0_61, %c0_62, %c0_63] : memref<1x16x128xf32, #tpu.memory_space<vmem>>, vector<1x16x128xf32>
    %154 = vector.shape_cast %153 : vector<1x16x128xf32> to vector<16x128xf32>
    %155 = vector.shape_cast %152 : vector<16x128xf32> to vector<1x16x128xf32>
    tpu.vector_store %arg15[%c0_61, %c0_62, %c0_63], %155 {strides = array<i32>} : memref<1x16x128xf32, #tpu.memory_space<vmem>>, vector<1x16x128xf32>,
    %c0_64 = arith.constant 0 : index
    %c0_65 = arith.constant 0 : index
    %156 = vector.load %arg13[%c0_64, %c0_65] : memref<32x128xbf16, #tpu.memory_space<vmem>>, vector<32x128xbf16>
    %cst_66 = arith.constant dense<0.000000e+00> : vector<8x128xf32>
    %157 = tpu.matmul %147, %156, %cst_66 {dimension_numbers = #tpu.dot_dimension_numbers<[1], [0], [0], [1], [0, 0, 1, 1], [], []>} : vector<8x32xbf16>, vector<32x128xbf16>, vector<8x128xf32> -> vector<8x128xf32>
    %c0_67 = arith.constant 0 : index
    %c0_68 = arith.constant 0 : index
    %158 = vector.load %arg14[%c0_67, %c0_68] : memref<1x128xf32, #tpu.memory_space<vmem>>, vector<1x128xf32>
    %159 = vector.broadcast %158 : vector<1x128xf32> to vector<8x128xf32>
    %160 = arith.addf %157, %159 : vector<8x128xf32>
    %c0_69 = arith.constant 0 : index
    %c0_70 = arith.constant 0 : index
    %c0_71 = arith.constant 0 : index
    %161 = vector.load %arg16[%c0_69, %c0_70, %c0_71] : memref<1x8x128xf32, #tpu.memory_space<vmem>>, vector<1x8x128xf32>
    %162 = vector.shape_cast %161 : vector<1x8x128xf32> to vector<8x128xf32>
    %163 = vector.shape_cast %160 : vector<8x128xf32> to vector<1x8x128xf32>
    tpu.vector_store %arg16[%c0_69, %c0_70, %c0_71], %163 {strides = array<i32>} : memref<1x8x128xf32, #tpu.memory_space<vmem>>, vector<1x8x128xf32>,
    return
  }
  func.func @transform_0(%arg0: i32) -> (i32, i32, i32) {
    %c0_i32 = arith.constant 0 : i32
    %c0_i32_0 = arith.constant 0 : i32
    %c0_i32_1 = arith.constant 0 : i32
    return %arg0, %c0_i32, %c0_i32_0 : i32, i32, i32
  }
  func.func @transform_1(%arg0: i32) -> (i32, i32, i32) {
    %c0_i32 = arith.constant 0 : i32
    %c0_i32_0 = arith.constant 0 : i32
    %c0_i32_1 = arith.constant 0 : i32
    return %arg0, %c0_i32, %c0_i32_0 : i32, i32, i32
  }
  func.func @transform_2(%arg0: i32) -> (i32, i32) {
    %c0_i32 = arith.constant 0 : i32
    %c0_i32_0 = arith.constant 0 : i32
    %c0_i32_1 = arith.constant 0 : i32
    return %c0_i32, %c0_i32_0 : i32, i32
  }
  func.func @transform_3(%arg0: i32) -> (i32, i32) {
    %c0_i32 = arith.constant 0 : i32
    %c0_i32_0 = arith.constant 0 : i32
    %c0_i32_1 = arith.constant 0 : i32
    return %c0_i32, %c0_i32_0 : i32, i32
  }
  func.func @transform_4(%arg0: i32) -> (i32, i32) {
    %c0_i32 = arith.constant 0 : i32
    %c0_i32_0 = arith.constant 0 : i32
    %c0_i32_1 = arith.constant 0 : i32
    return %c0_i32, %c0_i32_0 : i32, i32
  }
  func.func @transform_5(%arg0: i32) -> (i32, i32) {
    %c0_i32 = arith.constant 0 : i32
    %c0_i32_0 = arith.constant 0 : i32
    %c0_i32_1 = arith.constant 0 : i32
    return %c0_i32, %c0_i32_0 : i32, i32
  }
  func.func @transform_6(%arg0: i32) -> (i32, i32) {
    %c0_i32 = arith.constant 0 : i32
    %c0_i32_0 = arith.constant 0 : i32
    %c0_i32_1 = arith.constant 0 : i32
    return %c0_i32, %c0_i32_0 : i32, i32
  }
  func.func @transform_7(%arg0: i32) -> (i32, i32) {
    %c0_i32 = arith.constant 0 : i32
    %c0_i32_0 = arith.constant 0 : i32
    %c0_i32_1 = arith.constant 0 : i32
    return %c0_i32, %c0_i32_0 : i32, i32
  }
  func.func @transform_8(%arg0: i32) -> (i32, i32) {
    %c0_i32 = arith.constant 0 : i32
    %c0_i32_0 = arith.constant 0 : i32
    %c0_i32_1 = arith.constant 0 : i32
    return %c0_i32, %c0_i32_0 : i32, i32
  }
  func.func @transform_9(%arg0: i32) -> (i32, i32) {
    %c0_i32 = arith.constant 0 : i32
    %c0_i32_0 = arith.constant 0 : i32
    %c0_i32_1 = arith.constant 0 : i32
    return %c0_i32, %c0_i32_0 : i32, i32
  }
  func.func @transform_10(%arg0: i32) -> (i32, i32) {
    %c0_i32 = arith.constant 0 : i32
    %c0_i32_0 = arith.constant 0 : i32
    %c0_i32_1 = arith.constant 0 : i32
    return %c0_i32, %c0_i32_0 : i32, i32
  }
  func.func @transform_11(%arg0: i32) -> (i32, i32) {
    %c0_i32 = arith.constant 0 : i32
    %c0_i32_0 = arith.constant 0 : i32
    %c0_i32_1 = arith.constant 0 : i32
    return %c0_i32, %c0_i32_0 : i32, i32
  }
  func.func @transform_12(%arg0: i32) -> (i32, i32) {
    %c0_i32 = arith.constant 0 : i32
    %c0_i32_0 = arith.constant 0 : i32
    %c0_i32_1 = arith.constant 0 : i32
    return %c0_i32, %c0_i32_0 : i32, i32
  }
  func.func @transform_13(%arg0: i32) -> (i32, i32) {
    %c0_i32 = arith.constant 0 : i32
    %c0_i32_0 = arith.constant 0 : i32
    %c0_i32_1 = arith.constant 0 : i32
    return %c0_i32, %c0_i32_0 : i32, i32
  }
  func.func @transform_14(%arg0: i32) -> (i32, i32, i32) {
    %c0_i32 = arith.constant 0 : i32
    %c0_i32_0 = arith.constant 0 : i32
    %c0_i32_1 = arith.constant 0 : i32
    return %arg0, %c0_i32, %c0_i32_0 : i32, i32, i32
  }
  func.func @transform_15(%arg0: i32) -> (i32, i32, i32) {
    %c0_i32 = arith.constant 0 : i32
    %c0_i32_0 = arith.constant 0 : i32
    %c0_i32_1 = arith.constant 0 : i32
    return %arg0, %c0_i32, %c0_i32_0 : i32, i32, i32
  }
}

</mosaic_0001>

<llo_original>
// kernel: tpu_custom_call.1
$region0: #{tpu_custom_call.1}
  #allocation0 [shape = 'u32[]', space=smem, size = 0x4, offset = 0x4, fixed_abs, tag = 'smem constant byte address 0x4 - core index']
  #allocation1 [shape = 'u32[72,128]{1,0:T(1,128)}', space=vmem, size = 0x9000, scoped, tag = 'internal scratch']
  %s0 = inlined_call_operand.hbm [shape: bf16[2,16,32], index: 0, kind: input, shape index: {}]
  %s1 = inlined_call_operand.hbm [shape: bf16[2,8,32], index: 1, kind: input, shape index: {}]
  %s2 = inlined_call_operand.hbm [shape: bf16[32,32], index: 2, kind: input, shape index: {}]
  %s3 = inlined_call_operand.vmem [shape: f32[1,32], index: 3, kind: input, shape index: {}]
  %s4 = inlined_call_operand.hbm [shape: bf16[32,32], index: 4, kind: input, shape index: {}]
  %s5 = inlined_call_operand.vmem [shape: f32[1,32], index: 5, kind: input, shape index: {}]
  %s6 = inlined_call_operand.hbm [shape: bf16[32,32], index: 6, kind: input, shape index: {}]
  %s7 = inlined_call_operand.vmem [shape: f32[1,32], index: 7, kind: input, shape index: {}]
  %s8 = inlined_call_operand.hbm [shape: bf16[32,32], index: 8, kind: input, shape index: {}]
  %s9 = inlined_call_operand.vmem [shape: f32[1,32], index: 9, kind: input, shape index: {}]
  %s10 = inlined_call_operand.hbm [shape: bf16[32,128], index: 10, kind: input, shape index: {}]
  %s11 = inlined_call_operand.vmem [shape: f32[1,128], index: 11, kind: input, shape index: {}]
  %s12 = inlined_call_operand.hbm [shape: bf16[32,128], index: 12, kind: input, shape index: {}]
  %s13 = inlined_call_operand.vmem [shape: f32[1,128], index: 13, kind: input, shape index: {}]
  %s14 = inlined_call_operand.hbm [shape: f32[2,16,128], index: 14, kind: output, shape index: {0}]
  %s15 = inlined_call_operand.hbm [shape: f32[2,8,128], index: 15, kind: output, shape index: {1}]
  %16 = xla_tuple %s14, %s15
  %s17 = sld [smem:[#allocation0]]
  $region129: #{tpu_custom_call.1} parent=0
    _
  %s19 = ssub.s32 1, %s17
  %s20 = scalar_select 0, %s19, %s17
  $region1: #{tpu_custom_call.1} parent=0
    #allocation2 [shape = 'u8[8192]{0}', space=vmem, size = 0x2000, scoped, tag = 'input window, operand 0']
    #allocation3 [shape = 's32[2]{0}', space=sflag, size = 0x8, scoped, tag = 'scoped memory for tpu_custom_call.1']
    #allocation4 [shape = 's32[2]{0}', space=sflag, size = 0x8, scoped, tag = 'scoped memory for tpu_custom_call.1']
    #allocation5 [shape = 'u8[4096]{0}', space=vmem, size = 0x1000, scoped, tag = 'input window, operand 1']
    #allocation6 [shape = 's32[2]{0}', space=sflag, size = 0x8, scoped, tag = 'scoped memory for tpu_custom_call.1']
    #allocation7 [shape = 'u8[8192]{0}', space=vmem, size = 0x2000, scoped, tag = 'input window, operand 2, single buffered']
    #allocation8 [shape = 'u8[8192]{0}', space=vmem, size = 0x2000, scoped, tag = 'input window, operand 4, single buffered']
    #allocation9 [shape = 's32[1]{0}', space=sflag, size = 0x4, scoped, tag = 'scoped memory for tpu_custom_call.1']
    #allocation10 [shape = 'u8[8192]{0}', space=vmem, size = 0x2000, scoped, tag = 'input window, operand 6, single buffered']
    #allocation11 [shape = 'u8[8192]{0}', space=vmem, size = 0x2000, scoped, tag = 'input window, operand 8, single buffered']
    #allocation12 [shape = 's32[1]{0}', space=sflag, size = 0x4, scoped, tag = 'scoped memory for tpu_custom_call.1']
    #allocation13 [shape = 'u8[8192]{0}', space=vmem, size = 0x2000, scoped, tag = 'input window, operand 10, single buffered']
    #allocation14 [shape = 'u8[8192]{0}', space=vmem, size = 0x2000, scoped, tag = 'input window, operand 12, single buffered']
    #allocation15 [shape = 's32[1]{0}', space=sflag, size = 0x4, scoped, tag = 'scoped memory for tpu_custom_call.1']
    #allocation16 [shape = 'u8[16384]{0}', space=vmem, size = 0x4000, scoped, tag = 'output window, operand 0']
    #allocation17 [shape = 'u8[8192]{0}', space=vmem, size = 0x2000, scoped, tag = 'output window, operand 1']
    #allocation18 [shape = 's32[2]{0}', space=sflag, size = 0x8, scoped, tag = 'scoped memory for tpu_custom_call.1']
    %21 = vsyncpa [#allocation3], 0
    %s22 = scalar_lea.sflag [#allocation3], 1
    %23 = vsyncpa %s22, 0
    %24 = vsyncpa [#allocation6], 0
    %s25 = scalar_lea.sflag [#allocation6], 1
    %26 = vsyncpa %s25, 0
    %27 = vsyncpa [#allocation9], 0
    %28 = vsyncpa [#allocation12], 0
    %29 = vsyncpa [#allocation15], 0
    %30 = vsyncpa [#allocation4], 0
    %s31 = scalar_lea.sflag [#allocation4], 1
    %32 = vsyncpa %s31, 0
    %33 = vsyncpa [#allocation18], 0
    %s34 = scalar_lea.sflag [#allocation18], 1
    %35 = vsyncpa %s34, 0
    loop: start=0, step=1, limit=4
    $region2: #{tpu_custom_call.1} parent=1 // loop_pre_header
      _
    $region3: #{tpu_custom_call.1} parent=1 // loop_header
      %s37 = sphi 0, %s41
      %p38 = scmp.ge.s32.totalorder %s37, 4
      %s47 = sphi 0, %s49
      %s50 = sphi 0, %s47
      %s51 = sphi 0, %s50
      %s67 = sphi 0, %s51
      %s73 = sphi 0, %s75
      %s76 = sphi 0, %s73
      %s77 = sphi 0, %s76
      %s93 = sphi 0, %s77
      %s97 = sphi 0, %s97
      %s99 = sphi 0, %s97
      %s100 = sphi 0, %s99
      %s114 = sphi 0, %s100
      %s118 = sphi 0, %s118
      %s120 = sphi 0, %s118
      %s121 = sphi 0, %s120
      %s135 = sphi 0, %s121
      %s139 = sphi 0, %s139
      %s141 = sphi 0, %s139
      %s142 = sphi 0, %s141
      %s156 = sphi 0, %s142
      %s160 = sphi 0, %s160
      %s162 = sphi 0, %s160
      %s163 = sphi 0, %s162
      %s177 = sphi 0, %s163
      %s181 = sphi 0, %s181
      %s183 = sphi 0, %s181
      %s184 = sphi 0, %s183
      %s198 = sphi 0, %s184
      %s202 = sphi 0, %s202
      %s204 = sphi 0, %s202
      %s205 = sphi 0, %s204
      %s219 = sphi 0, %s205
      %s223 = sphi 0, %s223
      %s225 = sphi 0, %s223
      %s226 = sphi 0, %s225
      %s240 = sphi 0, %s226
      %s244 = sphi 0, %s244
      %s246 = sphi 0, %s244
      %s247 = sphi 0, %s246
      %s261 = sphi 0, %s247
      %s265 = sphi 0, %s265
      %s267 = sphi 0, %s265
      %s268 = sphi 0, %s267
      %s282 = sphi 0, %s268
      %s286 = sphi 0, %s286
      %s288 = sphi 0, %s286
      %s289 = sphi 0, %s288
      %s303 = sphi 0, %s289
      %s307 = sphi 0, %s307
      %s309 = sphi 0, %s307
      %s310 = sphi 0, %s309
      %s324 = sphi 0, %s310
      %s328 = sphi 0, %s328
      %s330 = sphi 0, %s328
      %s331 = sphi 0, %s330
      %s345 = sphi 0, %s331
      %s351 = sphi 0, %s353
      %s354 = sphi 0, %s351
      %s355 = sphi 0, %s354
      %s371 = sphi 0, %s355
      %s377 = sphi 0, %s379
      %s380 = sphi 0, %s377
      %s381 = sphi 0, %s380
      %s397 = sphi 0, %s381
    $region4: #{tpu_custom_call.1} parent=1 // loop_header_branch
      %40 = sbr.rel (%p38) target = $region8
    $region5: #{tpu_custom_call.1} parent=1 // loop_body
      %s42 = ssub.s32 %s37, 1
      %s43 = ssub.s32 %s37, 2
      %s44 = sadd.s32 %s37, 1
      %s45 = ssub.s32 %s37, %s44
      %p46 = scmp.eq.s32.totalorder %s45, 0
      %s48 = sadd.s32 %s47, 1
      %s49 = scalar_select %p46, %s47, %s48
      %p52 = pneg %p46
      %p53 = scmp.eq.s32.totalorder %s37, 1
      %p54 = por %p52, %p53
      %p55 = scmp.ne.s32.totalorder %s47, %s50
      %p56 = scmp.eq.s32.totalorder %s37, 0
      %p57 = por %p55, %p56
      %p58 = scmp.ne.s32.totalorder %s47, %s50
      %p59 = scmp.eq.s32.totalorder %s42, 1
      %p60 = por %p58, %p59
      %p61 = scmp.ne.s32.totalorder %s50, %s51
      %p62 = scmp.eq.s32.totalorder %s42, 0
      %p63 = por %p61, %p62
      %p64 = scmp.ne.s32.totalorder %s50, %s51
      %p65 = scmp.eq.s32.totalorder %s43, 1
      %p66 = por %p64, %p65
      %p68 = scmp.ne.s32.totalorder %s51, %s67
      %p69 = scmp.eq.s32.totalorder %s43, 0
      %p70 = por %p68, %p69
      %s71 = ssub.s32 %s37, %s44
      %p72 = scmp.eq.s32.totalorder %s71, 0
      %s74 = sadd.s32 %s73, 1
      %s75 = scalar_select %p72, %s73, %s74
      %p78 = pneg %p72
      %p79 = scmp.eq.s32.totalorder %s37, 1
      %p80 = por %p78, %p79
      %p81 = scmp.ne.s32.totalorder %s73, %s76
      %p82 = scmp.eq.s32.totalorder %s37, 0
      %p83 = por %p81, %p82
      %p84 = scmp.ne.s32.totalorder %s73, %s76
      %p85 = scmp.eq.s32.totalorder %s42, 1
      %p86 = por %p84, %p85
      %p87 = scmp.ne.s32.totalorder %s76, %s77
      %p88 = scmp.eq.s32.totalorder %s42, 0
      %p89 = por %p87, %p88
      %p90 = scmp.ne.s32.totalorder %s76, %s77
      %p91 = scmp.eq.s32.totalorder %s43, 1
      %p92 = por %p90, %p91
      %p94 = scmp.ne.s32.totalorder %s77, %s93
      %p95 = scmp.eq.s32.totalorder %s43, 0
      %p96 = por %p94, %p95
      %s98 = sadd.s32 %s97, 1
      %p101 = scmp.eq.s32.totalorder %s37, 1
      %p102 = scmp.ne.s32.totalorder %s97, %s99
      %p103 = scmp.eq.s32.totalorder %s37, 0
      %p104 = por %p102, %p103
      %p105 = scmp.ne.s32.totalorder %s97, %s99
      %p106 = scmp.eq.s32.totalorder %s42, 1
      %p107 = por %p105, %p106
      %p108 = scmp.ne.s32.totalorder %s99, %s100
      %p109 = scmp.eq.s32.totalorder %s42, 0
      %p110 = por %p108, %p109
      %p111 = scmp.ne.s32.totalorder %s99, %s100
      %p112 = scmp.eq.s32.totalorder %s43, 1
      %p113 = por %p111, %p112
      %p115 = scmp.ne.s32.totalorder %s100, %s114
      %p116 = scmp.eq.s32.totalorder %s43, 0
      %p117 = por %p115, %p116
      %s119 = sadd.s32 %s118, 1
      %p122 = scmp.eq.s32.totalorder %s37, 1
      %p123 = scmp.ne.s32.totalorder %s118, %s120
      %p124 = scmp.eq.s32.totalorder %s37, 0
      %p125 = por %p123, %p124
      %p126 = scmp.ne.s32.totalorder %s118, %s120
      %p127 = scmp.eq.s32.totalorder %s42, 1
      %p128 = por %p126, %p127
      %p129 = scmp.ne.s32.totalorder %s120, %s121
      %p130 = scmp.eq.s32.totalorder %s42, 0
      %p131 = por %p129, %p130
      %p132 = scmp.ne.s32.totalorder %s120, %s121
      %p133 = scmp.eq.s32.totalorder %s43, 1
      %p134 = por %p132, %p133
      %p136 = scmp.ne.s32.totalorder %s121, %s135
      %p137 = scmp.eq.s32.totalorder %s43, 0
      %p138 = por %p136, %p137
      %s140 = sadd.s32 %s139, 1
      %p143 = scmp.eq.s32.totalorder %s37, 1
      %p144 = scmp.ne.s32.totalorder %s139, %s141
      %p145 = scmp.eq.s32.totalorder %s37, 0
      %p146 = por %p144, %p145
      %p147 = scmp.ne.s32.totalorder %s139, %s141
      %p148 = scmp.eq.s32.totalorder %s42, 1
      %p149 = por %p147, %p148
      %p150 = scmp.ne.s32.totalorder %s141, %s142
      %p151 = scmp.eq.s32.totalorder %s42, 0
      %p152 = por %p150, %p151
      %p153 = scmp.ne.s32.totalorder %s141, %s142
      %p154 = scmp.eq.s32.totalorder %s43, 1
      %p155 = por %p153, %p154
      %p157 = scmp.ne.s32.totalorder %s142, %s156
      %p158 = scmp.eq.s32.totalorder %s43, 0
      %p159 = por %p157, %p158
      %s161 = sadd.s32 %s160, 1
      %p164 = scmp.eq.s32.totalorder %s37, 1
      %p165 = scmp.ne.s32.totalorder %s160, %s162
      %p166 = scmp.eq.s32.totalorder %s37, 0
      %p167 = por %p165, %p166
      %p168 = scmp.ne.s32.totalorder %s160, %s162
      %p169 = scmp.eq.s32.totalorder %s42, 1
      %p170 = por %p168, %p169
      %p171 = scmp.ne.s32.totalorder %s162, %s163
      %p172 = scmp.eq.s32.totalorder %s42, 0
      %p173 = por %p171, %p172
      %p174 = scmp.ne.s32.totalorder %s162, %s163
      %p175 = scmp.eq.s32.totalorder %s43, 1
      %p176 = por %p174, %p175
      %p178 = scmp.ne.s32.totalorder %s163, %s177
      %p179 = scmp.eq.s32.totalorder %s43, 0
      %p180 = por %p178, %p179
      %s182 = sadd.s32 %s181, 1
      %p185 = scmp.eq.s32.totalorder %s37, 1
      %p186 = scmp.ne.s32.totalorder %s181, %s183
      %p187 = scmp.eq.s32.totalorder %s37, 0
      %p188 = por %p186, %p187
      %p189 = scmp.ne.s32.totalorder %s181, %s183
      %p190 = scmp.eq.s32.totalorder %s42, 1
      %p191 = por %p189, %p190
      %p192 = scmp.ne.s32.totalorder %s183, %s184
      %p193 = scmp.eq.s32.totalorder %s42, 0
      %p194 = por %p192, %p193
      %p195 = scmp.ne.s32.totalorder %s183, %s184
      %p196 = scmp.eq.s32.totalorder %s43, 1
      %p197 = por %p195, %p196
      %p199 = scmp.ne.s32.totalorder %s184, %s198
      %p200 = scmp.eq.s32.totalorder %s43, 0
      %p201 = por %p199, %p200
      %s203 = sadd.s32 %s202, 1
      %p206 = scmp.eq.s32.totalorder %s37, 1
      %p207 = scmp.ne.s32.totalorder %s202, %s204
      %p208 = scmp.eq.s32.totalorder %s37, 0
      %p209 = por %p207, %p208
      %p210 = scmp.ne.s32.totalorder %s202, %s204
      %p211 = scmp.eq.s32.totalorder %s42, 1
      %p212 = por %p210, %p211
      %p213 = scmp.ne.s32.totalorder %s204, %s205
      %p214 = scmp.eq.s32.totalorder %s42, 0
      %p215 = por %p213, %p214
      %p216 = scmp.ne.s32.totalorder %s204, %s205
      %p217 = scmp.eq.s32.totalorder %s43, 1
      %p218 = por %p216, %p217
      %p220 = scmp.ne.s32.totalorder %s205, %s219
      %p221 = scmp.eq.s32.totalorder %s43, 0
      %p222 = por %p220, %p221
      %s224 = sadd.s32 %s223, 1
      %p227 = scmp.eq.s32.totalorder %s37, 1
      %p228 = scmp.ne.s32.totalorder %s223, %s225
      %p229 = scmp.eq.s32.totalorder %s37, 0
      %p230 = por %p228, %p229
      %p231 = scmp.ne.s32.totalorder %s223, %s225
      %p232 = scmp.eq.s32.totalorder %s42, 1
      %p233 = por %p231, %p232
      %p234 = scmp.ne.s32.totalorder %s225, %s226
      %p235 = scmp.eq.s32.totalorder %s42, 0
      %p236 = por %p234, %p235
      %p237 = scmp.ne.s32.totalorder %s225, %s226
      %p238 = scmp.eq.s32.totalorder %s43, 1
      %p239 = por %p237, %p238
      %p241 = scmp.ne.s32.totalorder %s226, %s240
      %p242 = scmp.eq.s32.totalorder %s43, 0
      %p243 = por %p241, %p242
      %s245 = sadd.s32 %s244, 1
      %p248 = scmp.eq.s32.totalorder %s37, 1
      %p249 = scmp.ne.s32.totalorder %s244, %s246
      %p250 = scmp.eq.s32.totalorder %s37, 0
      %p251 = por %p249, %p250
      %p252 = scmp.ne.s32.totalorder %s244, %s246
      %p253 = scmp.eq.s32.totalorder %s42, 1
      %p254 = por %p252, %p253
      %p255 = scmp.ne.s32.totalorder %s246, %s247
      %p256 = scmp.eq.s32.totalorder %s42, 0
      %p257 = por %p255, %p256
      %p258 = scmp.ne.s32.totalorder %s246, %s247
      %p259 = scmp.eq.s32.totalorder %s43, 1
      %p260 = por %p258, %p259
      %p262 = scmp.ne.s32.totalorder %s247, %s261
      %p263 = scmp.eq.s32.totalorder %s43, 0
      %p264 = por %p262, %p263
      %s266 = sadd.s32 %s265, 1
      %p269 = scmp.eq.s32.totalorder %s37, 1
      %p270 = scmp.ne.s32.totalorder %s265, %s267
      %p271 = scmp.eq.s32.totalorder %s37, 0
      %p272 = por %p270, %p271
      %p273 = scmp.ne.s32.totalorder %s265, %s267
      %p274 = scmp.eq.s32.totalorder %s42, 1
      %p275 = por %p273, %p274
      %p276 = scmp.ne.s32.totalorder %s267, %s268
      %p277 = scmp.eq.s32.totalorder %s42, 0
      %p278 = por %p276, %p277
      %p279 = scmp.ne.s32.totalorder %s267, %s268
      %p280 = scmp.eq.s32.totalorder %s43, 1
      %p281 = por %p279, %p280
      %p283 = scmp.ne.s32.totalorder %s268, %s282
      %p284 = scmp.eq.s32.totalorder %s43, 0
      %p285 = por %p283, %p284
      %s287 = sadd.s32 %s286, 1
      %p290 = scmp.eq.s32.totalorder %s37, 1
      %p291 = scmp.ne.s32.totalorder %s286, %s288
      %p292 = scmp.eq.s32.totalorder %s37, 0
      %p293 = por %p291, %p292
      %p294 = scmp.ne.s32.totalorder %s286, %s288
      %p295 = scmp.eq.s32.totalorder %s42, 1
      %p296 = por %p294, %p295
      %p297 = scmp.ne.s32.totalorder %s288, %s289
      %p298 = scmp.eq.s32.totalorder %s42, 0
      %p299 = por %p297, %p298
      %p300 = scmp.ne.s32.totalorder %s288, %s289
      %p301 = scmp.eq.s32.totalorder %s43, 1
      %p302 = por %p300, %p301
      %p304 = scmp.ne.s32.totalorder %s289, %s303
      %p305 = scmp.eq.s32.totalorder %s43, 0
      %p306 = por %p304, %p305
      %s308 = sadd.s32 %s307, 1
      %p311 = scmp.eq.s32.totalorder %s37, 1
      %p312 = scmp.ne.s32.totalorder %s307, %s309
      %p313 = scmp.eq.s32.totalorder %s37, 0
      %p314 = por %p312, %p313
      %p315 = scmp.ne.s32.totalorder %s307, %s309
      %p316 = scmp.eq.s32.totalorder %s42, 1
      %p317 = por %p315, %p316
      %p318 = scmp.ne.s32.totalorder %s309, %s310
      %p319 = scmp.eq.s32.totalorder %s42, 0
      %p320 = por %p318, %p319
      %p321 = scmp.ne.s32.totalorder %s309, %s310
      %p322 = scmp.eq.s32.totalorder %s43, 1
      %p323 = por %p321, %p322
      %p325 = scmp.ne.s32.totalorder %s310, %s324
      %p326 = scmp.eq.s32.totalorder %s43, 0
      %p327 = por %p325, %p326
      %s329 = sadd.s32 %s328, 1
      %p332 = scmp.eq.s32.totalorder %s37, 1
      %p333 = scmp.ne.s32.totalorder %s328, %s330
      %p334 = scmp.eq.s32.totalorder %s37, 0
      %p335 = por %p333, %p334
      %p336 = scmp.ne.s32.totalorder %s328, %s330
      %p337 = scmp.eq.s32.totalorder %s42, 1
      %p338 = por %p336, %p337
      %p339 = scmp.ne.s32.totalorder %s330, %s331
      %p340 = scmp.eq.s32.totalorder %s42, 0
      %p341 = por %p339, %p340
      %p342 = scmp.ne.s32.totalorder %s330, %s331
      %p343 = scmp.eq.s32.totalorder %s43, 1
      %p344 = por %p342, %p343
      %p346 = scmp.ne.s32.totalorder %s331, %s345
      %p347 = scmp.eq.s32.totalorder %s43, 0
      %p348 = por %p346, %p347
      %s349 = ssub.s32 %s37, %s44
      %p350 = scmp.eq.s32.totalorder %s349, 0
      %s352 = sadd.s32 %s351, 1
      %s353 = scalar_select %p350, %s351, %s352
      %p356 = pneg %p350
      %p357 = scmp.eq.s32.totalorder %s37, 1
      %p358 = por %p356, %p357
      %p359 = scmp.ne.s32.totalorder %s351, %s354
      %p360 = scmp.eq.s32.totalorder %s37, 0
      %p361 = por %p359, %p360
      %p362 = scmp.ne.s32.totalorder %s351, %s354
      %p363 = scmp.eq.s32.totalorder %s42, 1
      %p364 = por %p362, %p363
      %p365 = scmp.ne.s32.totalorder %s354, %s355
      %p366 = scmp.eq.s32.totalorder %s42, 0
      %p367 = por %p365, %p366
      %p368 = scmp.ne.s32.totalorder %s354, %s355
      %p369 = scmp.eq.s32.totalorder %s43, 1
      %p370 = por %p368, %p369
      %p372 = scmp.ne.s32.totalorder %s355, %s371
      %p373 = scmp.eq.s32.totalorder %s43, 0
      %p374 = por %p372, %p373
      %s375 = ssub.s32 %s37, %s44
      %p376 = scmp.eq.s32.totalorder %s375, 0
      %s378 = sadd.s32 %s377, 1
      %s379 = scalar_select %p376, %s377, %s378
      %p382 = pneg %p376
      %p383 = scmp.eq.s32.totalorder %s37, 1
      %p384 = por %p382, %p383
      %p385 = scmp.ne.s32.totalorder %s377, %s380
      %p386 = scmp.eq.s32.totalorder %s37, 0
      %p387 = por %p385, %p386
      %p388 = scmp.ne.s32.totalorder %s377, %s380
      %p389 = scmp.eq.s32.totalorder %s42, 1
      %p390 = por %p388, %p389
      %p391 = scmp.ne.s32.totalorder %s380, %s381
      %p392 = scmp.eq.s32.totalorder %s42, 0
      %p393 = por %p391, %p392
      %p394 = scmp.ne.s32.totalorder %s380, %s381
      %p395 = scmp.eq.s32.totalorder %s43, 1
      %p396 = por %p394, %p395
      %p398 = scmp.ne.s32.totalorder %s381, %s397
      %p399 = scmp.eq.s32.totalorder %s43, 0
      %p400 = por %p398, %p399
      %p401 = scmp.le.s32.totalorder 1, %s37
      %p402 = scmp.lt.s32.totalorder %s37, 3
      %p403 = pnand %p401, %p402
      %p404 = pneg %p403
      // Predicated region
      $region9: #{tpu_custom_call.1} parent=5 // pred_check
        _
      $region10: #{tpu_custom_call.1} parent=5 // pred_check_branch
        %406 = sbr.rel (%p403) target = $region12
      $region11: #{tpu_custom_call.1} parent=5 // pred_region
        %s407 = ssub.s32 %s37, 1
        // Predicated region
        $region13: #{tpu_custom_call.1} parent=11 // pred_check
          %p408 = pneg %p110
        $region14: #{tpu_custom_call.1} parent=11 // pred_check_branch
          %410 = sbr.rel (%p408) target = $region16
        $region15: #{tpu_custom_call.1} parent=11 // pred_region
          %412 = vsyncadd [#allocation6], 0
          %s413 = sshll.u32 %s2, 4
          %s414 = int_to_ptr.hbm [resolvable:$true] %s413
          %s415 = sshll.u32 [#allocation7], 4
          %s416 = int_to_ptr.vmem [resolvable:$true] %s415
          %421 = dma.hbm_to_vmem [thread:$0]  %s414, 256, %s416, [#allocation6], 64, 64, 4
        $region16: #{tpu_custom_call.1} parent=11 // pred_fallthru
          _
        // Predicated region
        $region17: #{tpu_custom_call.1} parent=11 // pred_check
          %p422 = pneg %p131
        $region18: #{tpu_custom_call.1} parent=11 // pred_check_branch
          %424 = sbr.rel (%p422) target = $region20
        $region19: #{tpu_custom_call.1} parent=11 // pred_region
          _
        $region20: #{tpu_custom_call.1} parent=11 // pred_fallthru
          _
        // Predicated region
        $region21: #{tpu_custom_call.1} parent=11 // pred_check
          %p425 = pneg %p152
        $region22: #{tpu_custom_call.1} parent=11 // pred_check_branch
          %427 = sbr.rel (%p425) target = $region24
        $region23: #{tpu_custom_call.1} parent=11 // pred_region
          %429 = vsyncadd [#allocation9], 0
          %s430 = sshll.u32 %s4, 4
          %s431 = int_to_ptr.hbm [resolvable:$true] %s430
          %s432 = sshll.u32 [#allocation8], 4
          %s433 = int_to_ptr.vmem [resolvable:$true] %s432
          %438 = dma.hbm_to_vmem [thread:$0]  %s431, 256, %s433, [#allocation9], 64, 64, 4
        $region24: #{tpu_custom_call.1} parent=11 // pred_fallthru
          _
        // Predicated region
        $region25: #{tpu_custom_call.1} parent=11 // pred_check
          %p439 = pneg %p173
        $region26: #{tpu_custom_call.1} parent=11 // pred_check_branch
          %441 = sbr.rel (%p439) target = $region28
        $region27: #{tpu_custom_call.1} parent=11 // pred_region
          _
        $region28: #{tpu_custom_call.1} parent=11 // pred_fallthru
          _
        // Predicated region
        $region29: #{tpu_custom_call.1} parent=11 // pred_check
          %p442 = pneg %p194
        $region30: #{tpu_custom_call.1} parent=11 // pred_check_branch
          %444 = sbr.rel (%p442) target = $region32
        $region31: #{tpu_custom_call.1} parent=11 // pred_region
          %446 = vsyncadd [#allocation9], 0
          %s447 = sshll.u32 %s6, 4
          %s448 = int_to_ptr.hbm [resolvable:$true] %s447
          %s449 = sshll.u32 [#allocation10], 4
          %s450 = int_to_ptr.vmem [resolvable:$true] %s449
          %455 = dma.hbm_to_vmem [thread:$0]  %s448, 256, %s450, [#allocation9], 64, 64, 4
        $region32: #{tpu_custom_call.1} parent=11 // pred_fallthru
          _
        // Predicated region
        $region33: #{tpu_custom_call.1} parent=11 // pred_check
          %p456 = pneg %p215
        $region34: #{tpu_custom_call.1} parent=11 // pred_check_branch
          %458 = sbr.rel (%p456) target = $region36
        $region35: #{tpu_custom_call.1} parent=11 // pred_region
          _
        $region36: #{tpu_custom_call.1} parent=11 // pred_fallthru
          _
        // Predicated region
        $region37: #{tpu_custom_call.1} parent=11 // pred_check
          %p459 = pneg %p236
        $region38: #{tpu_custom_call.1} parent=11 // pred_check_branch
          %461 = sbr.rel (%p459) target = $region40
        $region39: #{tpu_custom_call.1} parent=11 // pred_region
          %463 = vsyncadd [#allocation12], 0
          %s464 = sshll.u32 %s8, 4
          %s465 = int_to_ptr.hbm [resolvable:$true] %s464
          %s466 = sshll.u32 [#allocation11], 4
          %s467 = int_to_ptr.vmem [resolvable:$true] %s466
          %472 = dma.hbm_to_vmem [thread:$0]  %s465, 256, %s467, [#allocation12], 64, 64, 4
        $region40: #{tpu_custom_call.1} parent=11 // pred_fallthru
          _
        // Predicated region
        $region41: #{tpu_custom_call.1} parent=11 // pred_check
          %p473 = pneg %p257
        $region42: #{tpu_custom_call.1} parent=11 // pred_check_branch
          %475 = sbr.rel (%p473) target = $region44
        $region43: #{tpu_custom_call.1} parent=11 // pred_region
          _
        $region44: #{tpu_custom_call.1} parent=11 // pred_fallthru
          _
        // Predicated region
        $region45: #{tpu_custom_call.1} parent=11 // pred_check
          %p476 = pneg %p278
        $region46: #{tpu_custom_call.1} parent=11 // pred_check_branch
          %478 = sbr.rel (%p476) target = $region48
        $region47: #{tpu_custom_call.1} parent=11 // pred_region
          %480 = vsyncadd [#allocation12], 0
          %s481 = sshll.u32 %s10, 4
          %s482 = int_to_ptr.hbm [resolvable:$true] %s481
          %s483 = sshll.u32 [#allocation13], 4
          %s484 = int_to_ptr.vmem [resolvable:$true] %s483
          %489 = dma.hbm_to_vmem [thread:$0]  %s482, 256, %s484, [#allocation12], 64, 64, 4
        $region48: #{tpu_custom_call.1} parent=11 // pred_fallthru
          _
        // Predicated region
        $region49: #{tpu_custom_call.1} parent=11 // pred_check
          %p490 = pneg %p299
        $region50: #{tpu_custom_call.1} parent=11 // pred_check_branch
          %492 = sbr.rel (%p490) target = $region52
        $region51: #{tpu_custom_call.1} parent=11 // pred_region
          _
        $region52: #{tpu_custom_call.1} parent=11 // pred_fallthru
          _
        // Predicated region
        $region53: #{tpu_custom_call.1} parent=11 // pred_check
          %p493 = pneg %p320
        $region54: #{tpu_custom_call.1} parent=11 // pred_check_branch
          %495 = sbr.rel (%p493) target = $region56
        $region55: #{tpu_custom_call.1} parent=11 // pred_region
          %497 = vsyncadd [#allocation15], 0
          %s498 = sshll.u32 %s12, 4
          %s499 = int_to_ptr.hbm [resolvable:$true] %s498
          %s500 = sshll.u32 [#allocation14], 4
          %s501 = int_to_ptr.vmem [resolvable:$true] %s500
          %506 = dma.hbm_to_vmem [thread:$0]  %s499, 256, %s501, [#allocation15], 64, 64, 4
        $region56: #{tpu_custom_call.1} parent=11 // pred_fallthru
          _
        // Predicated region
        $region57: #{tpu_custom_call.1} parent=11 // pred_check
          %p507 = pneg %p341
        $region58: #{tpu_custom_call.1} parent=11 // pred_check_branch
          %509 = sbr.rel (%p507) target = $region60
        $region59: #{tpu_custom_call.1} parent=11 // pred_region
          _
        $region60: #{tpu_custom_call.1} parent=11 // pred_fallthru
          _
      $region12: #{tpu_custom_call.1} parent=5 // pred_fallthru
        _
      %p510 = scmp.lt.s32.totalorder %s37, 2
      // Predicated region
      $region61: #{tpu_custom_call.1} parent=5 // pred_check
        %p511 = pneg %p510
      $region62: #{tpu_custom_call.1} parent=5 // pred_check_branch
        %513 = sbr.rel (%p511) target = $region64
      $region63: #{tpu_custom_call.1} parent=5 // pred_region
        // Predicated region
        $region65: #{tpu_custom_call.1} parent=63 // pred_check
          %p514 = pneg %p57
        $region66: #{tpu_custom_call.1} parent=63 // pred_check_branch
          %516 = sbr.rel (%p514) target = $region68
        $region67: #{tpu_custom_call.1} parent=63 // pred_region
          %s517 = sand.u32 %s47, 1
          %s518 = scalar_lea.sflag [#allocation3], %s517
          %s519 = sand.u32 %s47, 1
          %s520 = smul.addr %s519, 8
          %s521 = scalar_lea.vmem [#allocation2], %s520
          %523 = vsyncadd %s518, 0
          %s524 = smul.addr %s37, 2
          %s525 = smul.addr %s524, 4
          %s526 = scalar_lea.hbm %s0, %s525
          %s527 = sshll.u32 %s526, 4
          %s528 = int_to_ptr.hbm [resolvable:$true] %s527
          %s529 = sshll.u32 %s521, 4
          %s530 = int_to_ptr.vmem [resolvable:$true] %s529
          %535 = dma.hbm_to_vmem [thread:$0]  %s528, 128, %s530, %s518, 64, 64, 4
        $region68: #{tpu_custom_call.1} parent=63 // pred_fallthru
          _
        // Predicated region
        $region69: #{tpu_custom_call.1} parent=63 // pred_check
          %p536 = pneg %p83
        $region70: #{tpu_custom_call.1} parent=63 // pred_check_branch
          %538 = sbr.rel (%p536) target = $region72
        $region71: #{tpu_custom_call.1} parent=63 // pred_region
          %s539 = sand.u32 %s37, 1
          %s540 = scalar_lea.sflag [#allocation6], %s539
          %s541 = sand.u32 %s73, 1
          %s542 = smul.addr %s541, 4
          %s543 = scalar_lea.vmem [#allocation5], %s542
          %545 = vsyncadd %s540, 0
          %s546 = smul.addr %s37, 4
          %s547 = scalar_lea.hbm %s1, %s546
          %s549 = sshll.u32 %s547, 4
          %s550 = int_to_ptr.hbm [resolvable:$true] %s549
          %s551 = sshll.u32 %s543, 4
          %s552 = int_to_ptr.vmem [resolvable:$true] %s551
          %554 = dma.hbm_to_vmem [thread:$0]  %s550, 64, %s552, %s540
        $region72: #{tpu_custom_call.1} parent=63 // pred_fallthru
          _
      $region64: #{tpu_custom_call.1} parent=5 // pred_fallthru
        _
      %p555 = scmp.le.s32.totalorder 1, %s37
      %p556 = scmp.lt.s32.totalorder %s37, 3
      %p557 = pnand %p555, %p556
      %p558 = pneg %p557
      // Predicated region
      $region73: #{tpu_custom_call.1} parent=5 // pred_check
        _
      $region74: #{tpu_custom_call.1} parent=5 // pred_check_branch
        %560 = sbr.rel (%p557) target = $region76
      $region75: #{tpu_custom_call.1} parent=5 // pred_region
        %s561 = ssub.s32 %s37, 1
        %s562 = sand.u32 %s50, 1
        %s563 = scalar_lea.sflag [#allocation3], %s562
        %s564 = sand.u32 %s50, 1
        %s565 = smul.addr %s564, 8
        %s566 = scalar_lea.vmem [#allocation2], %s565
        // Predicated region
        $region77: #{tpu_custom_call.1} parent=75 // pred_check
          %p567 = pneg %p63
        $region78: #{tpu_custom_call.1} parent=75 // pred_check_branch
          %569 = sbr.rel (%p567) target = $region80
        $region79: #{tpu_custom_call.1} parent=75 // pred_region
          %571 = dma.done %s563, 128
        $region80: #{tpu_custom_call.1} parent=75 // pred_fallthru
          _
        %s572 = sand.u32 %s42, 1
        %s573 = scalar_lea.sflag [#allocation6], %s572
        %s574 = sand.u32 %s76, 1
        %s575 = smul.addr %s574, 4
        %s576 = scalar_lea.vmem [#allocation5], %s575
        // Predicated region
        $region81: #{tpu_custom_call.1} parent=75 // pred_check
          %p577 = pneg %p89
        $region82: #{tpu_custom_call.1} parent=75 // pred_check_branch
          %579 = sbr.rel (%p577) target = $region84
        $region83: #{tpu_custom_call.1} parent=75 // pred_region
          %581 = dma.done %s573, 64
        $region84: #{tpu_custom_call.1} parent=75 // pred_fallthru
          _
        // Predicated region
        $region85: #{tpu_custom_call.1} parent=75 // pred_check
          %p582 = pneg %p110
        $region86: #{tpu_custom_call.1} parent=75 // pred_check_branch
          %584 = sbr.rel (%p582) target = $region88
        $region87: #{tpu_custom_call.1} parent=75 // pred_region
          %586 = dma.done [#allocation6], 256
        $region88: #{tpu_custom_call.1} parent=75 // pred_fallthru
          _
        // Predicated region
        $region89: #{tpu_custom_call.1} parent=75 // pred_check
          %p587 = pneg %p152
        $region90: #{tpu_custom_call.1} parent=75 // pred_check_branch
          %589 = sbr.rel (%p587) target = $region92
        $region91: #{tpu_custom_call.1} parent=75 // pred_region
          %591 = dma.done [#allocation9], 256
        $region92: #{tpu_custom_call.1} parent=75 // pred_fallthru
          _
        // Predicated region
        $region93: #{tpu_custom_call.1} parent=75 // pred_check
          %p592 = pneg %p194
        $region94: #{tpu_custom_call.1} parent=75 // pred_check_branch
          %594 = sbr.rel (%p592) target = $region96
        $region95: #{tpu_custom_call.1} parent=75 // pred_region
          %596 = dma.done [#allocation9], 256
        $region96: #{tpu_custom_call.1} parent=75 // pred_fallthru
          _
        // Predicated region
        $region97: #{tpu_custom_call.1} parent=75 // pred_check
          %p597 = pneg %p236
        $region98: #{tpu_custom_call.1} parent=75 // pred_check_branch
          %599 = sbr.rel (%p597) target = $region100
        $region99: #{tpu_custom_call.1} parent=75 // pred_region
          %601 = dma.done [#allocation12], 256
        $region100: #{tpu_custom_call.1} parent=75 // pred_fallthru
          _
        // Predicated region
        $region101: #{tpu_custom_call.1} parent=75 // pred_check
          %p602 = pneg %p278
        $region102: #{tpu_custom_call.1} parent=75 // pred_check_branch
          %604 = sbr.rel (%p602) target = $region104
        $region103: #{tpu_custom_call.1} parent=75 // pred_region
          %606 = dma.done [#allocation12], 256
        $region104: #{tpu_custom_call.1} parent=75 // pred_fallthru
          _
        // Predicated region
        $region105: #{tpu_custom_call.1} parent=75 // pred_check
          %p607 = pneg %p320
        $region106: #{tpu_custom_call.1} parent=75 // pred_check_branch
          %609 = sbr.rel (%p607) target = $region108
        $region107: #{tpu_custom_call.1} parent=75 // pred_region
          %611 = dma.done [#allocation15], 256
        $region108: #{tpu_custom_call.1} parent=75 // pred_fallthru
          _
        %s612 = sand.u32 %s50, 1
        %s613 = scalar_lea.sflag [#allocation3], %s612
        %s614 = sand.u32 %s50, 1
        %s615 = smul.addr %s614, 8
        %s616 = scalar_lea.vmem [#allocation2], %s615
        %p617 = pneg %p63
        %p618 = pneg %p60
        %s619 = sand.u32 %s42, 1
        %s620 = scalar_lea.sflag [#allocation6], %s619
        %s621 = sand.u32 %s76, 1
        %s622 = smul.addr %s621, 4
        %s623 = scalar_lea.vmem [#allocation5], %s622
        %p624 = pneg %p89
        %p625 = pneg %p86
        %p626 = pneg %p110
        %p627 = pneg %p107
        %p628 = pneg %p131
        %p629 = pneg %p128
        %p630 = pneg %p152
        %p631 = pneg %p149
        %p632 = pneg %p173
        %p633 = pneg %p170
        %p634 = pneg %p194
        %p635 = pneg %p191
        %p636 = pneg %p215
        %p637 = pneg %p212
        %p638 = pneg %p236
        %p639 = pneg %p233
        %p640 = pneg %p257
        %p641 = pneg %p254
        %p642 = pneg %p278
        %p643 = pneg %p275
        %p644 = pneg %p299
        %p645 = pneg %p296
        %p646 = pneg %p320
        %p647 = pneg %p317
        %p648 = pneg %p341
        %p649 = pneg %p338
        %p650 = pneg %p367
        %p651 = pneg %p364
        %s652 = sand.u32 %s354, 1
        %s653 = scalar_lea.sflag [#allocation4], %s652
        %s654 = sand.u32 %s354, 1
        %s655 = smul.addr %s654, 16
        %s656 = scalar_lea.vmem [#allocation16], %s655
        %p657 = pneg %p393
        %p658 = pneg %p390
        %s659 = sand.u32 %s380, 1
        %s660 = scalar_lea.sflag [#allocation18], %s659
        %s661 = sand.u32 %s380, 1
        %s662 = smul.addr %s661, 8
        %s663 = scalar_lea.vmem [#allocation17], %s662
        %v665 = vld [vmem:[%s566] sm:$0xf]
        %v666 = vld [vmem:[%s566 + $0x4] sm:$0xf]
        %v667 = vld [vmem:[%s576] sm:$0xf]
        %v668 = vld [vmem:[#allocation7] sm:$0xf]
        %v669 = vld [vmem:[#allocation7 + $0x4] sm:$0xf]
        %v670 = vld [vmem:[#allocation7 + $0x8] sm:$0xf]
        %v671 = vld [vmem:[#allocation7 + $0xc] sm:$0xf]
        %v672 = vld [vmem:[%s3] sm:$0x1]
        %v674 = vperm.slane %v672, 0
        %v678 = vunpack.c.l.b16 %v665
        %v679 = vunpack.c.l.b16 %v666
        %v680 = vpack.c.b16 %v679, %v678
        %v685 = vunpack.c.l.b16 %v668
        %v686 = vunpack.c.l.b16 %v669
        %v687 = vunpack.c.l.b16 %v670
        %v688 = vunpack.c.l.b16 %v671
        %v689 = vpack.c.b16 %v686, %v685
        %v690 = vpack.c.b16 %v688, %v687
        %vm693 = vcmask 261120
        %v695 = vsel %vm693, %v680, 0
        %697 = vmatpush.bf16.msra.mxu0 0
        %698 = vmatpush.bf16.msra.mxu0 0
        %699 = vmatpush.bf16.msra.mxu0 0
        %700 = vmatpush.bf16.msra.mxu0 0
        %701 = vmatpush.bf16.msra.mxu0 0
        %702 = vmatpush.bf16.msra.mxu0 0
        %703 = vmatpush.bf16.msra.mxu0 %v690
        %704 = vmatpush.bf16.msra.mxu0 %v689
        %705 = vmatmul.bf16.gmra.mxu0 %v695
        %v706 = vpop.f32.mrf.mxu0
        %v707 = vadd.f32 %v674, %v706
        %v708 = vpop.f32.mrf.mxu0
        %v709 = vadd.f32 %v674, %v708
        %710 = vdwg.mxu0
        %v711 = vld [vmem:[#allocation8] sm:$0xf]
        %v712 = vld [vmem:[#allocation8 + $0x4] sm:$0xf]
        %v713 = vld [vmem:[#allocation8 + $0x8] sm:$0xf]
        %v714 = vld [vmem:[#allocation8 + $0xc] sm:$0xf]
        %v715 = vld [vmem:[%s5] sm:$0x1]
        %v717 = vperm.slane %v715, 0
        %v723 = vunpack.c.l.b16 %v711
        %v724 = vunpack.c.l.b16 %v712
        %v725 = vunpack.c.l.b16 %v713
        %v726 = vunpack.c.l.b16 %v714
        %v727 = vpack.c.b16 %v724, %v723
        %v728 = vpack.c.b16 %v726, %v725
        %v732 = vsel %vm693, %v667, 0
        %734 = vmatpush.bf16.msra.mxu0 0
        %735 = vmatpush.bf16.msra.mxu0 0
        %736 = vmatpush.bf16.msra.mxu0 0
        %737 = vmatpush.bf16.msra.mxu0 0
        %738 = vmatpush.bf16.msra.mxu0 0
        %739 = vmatpush.bf16.msra.mxu0 0
        %740 = vmatpush.bf16.msra.mxu0 %v728
        %741 = vmatpush.bf16.msra.mxu0 %v727
        %742 = vmatmul.bf16.gmra.mxu0 %v732
        %v743 = vpop.f32.mrf.mxu0
        %v744 = vadd.f32 %v717, %v743
        %v745 = vpop.f32.mrf.mxu0
        %746 = vdwg.mxu0
        %v747 = vld [vmem:[#allocation10] sm:$0xf]
        %v748 = vld [vmem:[#allocation10 + $0x4] sm:$0xf]
        %v749 = vld [vmem:[#allocation10 + $0x8] sm:$0xf]
        %v750 = vld [vmem:[#allocation10 + $0xc] sm:$0xf]
        %v751 = vld [vmem:[%s7] sm:$0x1]
        %v753 = vperm.slane %v751, 0
        %v759 = vunpack.c.l.b16 %v747
        %v760 = vunpack.c.l.b16 %v748
        %v761 = vunpack.c.l.b16 %v749
        %v762 = vunpack.c.l.b16 %v750
        %v763 = vpack.c.b16 %v760, %v759
        %v764 = vpack.c.b16 %v762, %v761
        %767 = vmatpush.bf16.msra.mxu0 0
        %768 = vmatpush.bf16.msra.mxu0 0
        %769 = vmatpush.bf16.msra.mxu0 0
        %770 = vmatpush.bf16.msra.mxu0 0
        %771 = vmatpush.bf16.msra.mxu0 0
        %772 = vmatpush.bf16.msra.mxu0 0
        %773 = vmatpush.bf16.msra.mxu0 %v764
        %774 = vmatpush.bf16.msra.mxu0 %v763
        %775 = vmatmul.bf16.gmra.mxu0 %v695
        %v776 = vpop.f32.mrf.mxu0
        %v777 = vadd.f32 %v753, %v776
        %v778 = vpop.f32.mrf.mxu0
        %v779 = vadd.f32 %v753, %v778
        %780 = vdwg.mxu0
        %v781 = vld [vmem:[#allocation11] sm:$0xf]
        %v782 = vld [vmem:[#allocation11 + $0x4] sm:$0xf]
        %v783 = vld [vmem:[#allocation11 + $0x8] sm:$0xf]
        %v784 = vld [vmem:[#allocation11 + $0xc] sm:$0xf]
        %v785 = vld [vmem:[%s9] sm:$0x1]
        %v787 = vperm.slane %v785, 0
        %v793 = vunpack.c.l.b16 %v781
        %v794 = vunpack.c.l.b16 %v782
        %v795 = vunpack.c.l.b16 %v783
        %v796 = vunpack.c.l.b16 %v784
        %v797 = vpack.c.b16 %v794, %v793
        %v798 = vpack.c.b16 %v796, %v795
        %801 = vmatpush.bf16.msra.mxu0 0
        %802 = vmatpush.bf16.msra.mxu0 0
        %803 = vmatpush.bf16.msra.mxu0 0
        %804 = vmatpush.bf16.msra.mxu0 0
        %805 = vmatpush.bf16.msra.mxu0 0
        %806 = vmatpush.bf16.msra.mxu0 0
        %807 = vmatpush.bf16.msra.mxu0 %v798
        %808 = vmatpush.bf16.msra.mxu0 %v797
        %809 = vmatmul.bf16.gmra.mxu0 %v732
        %v810 = vpop.f32.mrf.mxu0
        %v811 = vadd.f32 %v787, %v810
        %v812 = vpop.f32.mrf.mxu0
        %813 = vdwg.mxu0
        %v814 = vpack.c.bf16 %v707, %v707
        %v815 = vpack.c.bf16 %v709, %v709
        %v816 = vpack.c.bf16 %v744, %v744
        %v817 = vpack.c.bf16 %v777, %v777
        %v818 = vpack.c.bf16 %v779, %v779
        %v819 = vpack.c.bf16 %v811, %v811
        %v822 = vunpack.c.l.b16 %v814
        %v823 = vunpack.c.l.b16 %v815
        %v824 = vpack.c.b16 %v823, %v822
        %vm825 = vcmask 64512
        %v827 = vsel %vm825, %v824, 0
        %v830 = vsel %vm825, %v816, 0
        %832 = vmatpush.bf16.xpose.msra.mxu0 0
        %833 = vmatpush.bf16.xpose.msra.mxu0 0
        %834 = vmatpush.bf16.xpose.msra.mxu0 0
        %835 = vmatpush.bf16.xpose.msra.mxu0 0
        %836 = vmatpush.bf16.xpose.msra.mxu0 0
        %837 = vmatpush.bf16.xpose.msra.mxu0 0
        %838 = vmatpush.bf16.xpose.msra.mxu0 0
        %839 = vmatpush.bf16.xpose.msra.mxu0 %v830
        %840 = vmatmul.bf16.gmra.mxu0 %v827
        %v841 = vpop.f32.mrf.mxu0
        %v842 = vadd.f32 0.0, %v841
        %v843 = vpop.f32.mrf.mxu0
        %v844 = vadd.f32 0.0, %v843
        %845 = vdwg.mxu0
        %v846 = vsel %vm825, %v842, -inf
        %v847 = vsel %vm825, %v844, -inf
        %v848 = vmax.f32 %v846, %v847
        %849 = vmax.xlane.f32.xlu0 %v848
        %v850 = vpop.xlane.xlu0 %849
        %v851 = vrot.slane %v850, 4
        %v852 = vmax.f32 %v850, %v851
        %v853 = vrot.slane %v852, 2
        %v854 = vmax.f32 %v852, %v853
        %v855 = vrot.slane %v854, 1
        %v856 = vmax.f32 %v854, %v855
        %s857 = vtos %v856
        %v858 = vstv %s857
        %v859 = vsub.f32 %v842, %v858
        %v860 = vsub.f32 %v844, %v858
        %v861 = vmul.f32 %v859, 1.442695
        %v862 = vpow.pop %v861
        %v863 = vmul.f32 %v860, 1.442695
        %v864 = vpow.pop %v863
        %v865 = vpack.c.bf16 %v864, %v862
        %v866 = vsel %vm825, %v862, 0.0
        %867 = vadd.xlane.f32.xlu0 %v866
        %v868 = vpop.xlane.xlu0 %867
        %v869 = vsel %vm825, %v864, 0.0
        %870 = vadd.xlane.f32.xlu0 %v869
        %v871 = vpop.xlane.xlu0 %870
        %v872 = vrcp.pop %v868
        %v873 = vmul.f32 %v868, %v872
        %v874 = vsub.f32 1.0, %v873
        %v875 = vmul.f32 %v872, %v874
        %v876 = vadd.f32 %v872, %v875
        %vm877 = vweird.f32 %v868
        %vm878 = vweird.f32 %v872
        %vm879 = vmor %vm877, %vm878
        %v880 = vsel %vm879, %v872, %v876
        %v881 = vand.u32 2147483647, %v868
        %vm882 = vcmp.eq.f32.partialorder %v881, 8.507059e+37
        %v883 = vand.u32 %v868, 2147483648
        %v884 = vor.u32 1.1754944e-38, %v883
        %v885 = vsel %vm882, %v884, %v880
        %v886 = vmul.f32 1.0, %v885
        %v887 = vrcp.pop %v871
        %v888 = vmul.f32 %v871, %v887
        %v889 = vsub.f32 1.0, %v888
        %v890 = vmul.f32 %v887, %v889
        %v891 = vadd.f32 %v887, %v890
        %vm892 = vweird.f32 %v871
        %vm893 = vweird.f32 %v887
        %vm894 = vmor %vm892, %vm893
        %v895 = vsel %vm894, %v887, %v891
        %v896 = vand.u32 2147483647, %v871
        %vm897 = vcmp.eq.f32.partialorder %v896, 8.507059e+37
        %v898 = vand.u32 %v871, 2147483648
        %v899 = vor.u32 1.1754944e-38, %v898
        %v900 = vsel %vm897, %v899, %v895
        %v901 = vmul.f32 1.0, %v900
        %v903 = vsel %vm825, %v865, 0
        %vm905 = vcmask 1043456
        %v907 = vsel %vm905, %v819, 0
        %909 = vmatpush.bf16.msra.mxu0 0
        %910 = vmatpush.bf16.msra.mxu0 0
        %911 = vmatpush.bf16.msra.mxu0 0
        %912 = vmatpush.bf16.msra.mxu0 0
        %913 = vmatpush.bf16.msra.mxu0 0
        %914 = vmatpush.bf16.msra.mxu0 0
        %915 = vmatpush.bf16.msra.mxu0 0
        %916 = vmatpush.bf16.msra.mxu0 %v907
        %917 = vmatmul.bf16.gmra.mxu0 %v903
        %v918 = vpop.f32.mrf.mxu0
        %v919 = vadd.f32 0.0, %v918
        %v920 = vpop.f32.mrf.mxu0
        %v921 = vadd.f32 0.0, %v920
        %922 = vdwg.mxu0
        %v923 = vmul.f32 %v919, %v886
        %v924 = vmul.f32 %v921, %v901
        %925 = vxpose.xlu0.b32.start [1/16] %v862, 128
        %926 = vxpose.xlu0.b32.cont [2/16] %v864, 128
        %927 = vxpose.xlu0.b32.cont [3/16] 0.0, 128
        %928 = vxpose.xlu0.b32.cont [4/16] 0.0, 128
        %929 = vxpose.xlu0.b32.cont [5/16] 0.0, 128
        %930 = vxpose.xlu0.b32.cont [6/16] 0.0, 128
        %931 = vxpose.xlu0.b32.cont [7/16] 0.0, 128
        %932 = vxpose.xlu0.b32.cont [8/16] 0.0, 128
        %933 = vxpose.xlu0.b32.cont [9/16] 0.0, 128
        %934 = vxpose.xlu0.b32.cont [10/16] 0.0, 128
        %935 = vxpose.xlu0.b32.cont [11/16] 0.0, 128
        %936 = vxpose.xlu0.b32.cont [12/16] 0.0, 128
        %937 = vxpose.xlu0.b32.cont [13/16] 0.0, 128
        %938 = vxpose.xlu0.b32.cont [14/16] 0.0, 128
        %939 = vxpose.xlu0.b32.cont [15/16] 0.0, 128
        %940 = vxpose.xlu0.b32.end [16/16] 0.0, 128
        %v941 = vpop.trf.xlu0
        %v942 = vpop.trf.xlu0
        %v943 = vpop.trf.xlu0
        %v944 = vpop.trf.xlu0
        %v945 = vpop.trf.xlu0
        %v946 = vpop.trf.xlu0
        %v947 = vpop.trf.xlu0
        %v948 = vpop.trf.xlu0
        %v949 = vpop.trf.xlu0
        %v950 = vpop.trf.xlu0
        %v951 = vpop.trf.xlu0
        %v952 = vpop.trf.xlu0
        %v953 = vpop.trf.xlu0
        %v954 = vpop.trf.xlu0
        %v955 = vpop.trf.xlu0
        %v956 = vpop.trf.xlu0
        %vm957 = vcmask 130048
        %v958 = vsel %vm957, %v941, 0.0
        %959 = vadd.xlane.f32.xlu0 %v958
        %v960 = vpop.xlane.xlu0 %959
        %v961 = vrcp.pop %v960
        %v962 = vmul.f32 %v960, %v961
        %v963 = vsub.f32 1.0, %v962
        %v964 = vmul.f32 %v961, %v963
        %v965 = vadd.f32 %v961, %v964
        %vm966 = vweird.f32 %v960
        %vm967 = vweird.f32 %v961
        %vm968 = vmor %vm966, %vm967
        %v969 = vsel %vm968, %v961, %v965
        %v970 = vand.u32 2147483647, %v960
        %vm971 = vcmp.eq.f32.partialorder %v970, 8.507059e+37
        %v972 = vand.u32 %v960, 2147483648
        %v973 = vor.u32 1.1754944e-38, %v972
        %v974 = vsel %vm971, %v973, %v969
        %v975 = vmul.f32 1.0, %v974
        %v976 = vpack.c.bf16 %v941, %v941
        %v979 = vunpack.c.l.b16 %v817
        %v980 = vunpack.c.l.b16 %v818
        %v981 = vpack.c.b16 %v980, %v979
        %v984 = vsel %vm957, %v976, 0
        %986 = vmatpush.bf16.msra.mxu0 0
        %987 = vmatpush.bf16.msra.mxu0 0
        %988 = vmatpush.bf16.msra.mxu0 0
        %989 = vmatpush.bf16.msra.mxu0 0
        %990 = vmatpush.bf16.msra.mxu0 0
        %991 = vmatpush.bf16.msra.mxu0 0
        %992 = vmatpush.bf16.msra.mxu0 0
        %993 = vmatpush.bf16.msra.mxu0 %v981
        %994 = vmatmul.bf16.gmra.mxu0 %v984
        %v995 = vpop.f32.mrf.mxu0
        %v996 = vadd.f32 0.0, %v995
        %v997 = vpop.f32.mrf.mxu0
        %998 = vdwg.mxu0
        %v999 = vmul.f32 %v996, %v975
        %1000 = vrot.lane.b32.xlu0 %v824, 120
        %v1001 = vpop.permute.xlu0 %1000
        %v1003 = vunpack.c.l.b16 %v816
        %v1004 = vpack.c.b16 %v1003, %v1003
        %1005 = vrot.lane.b32.xlu0 %v1004, 120
        %v1006 = vpop.permute.xlu0 %1005
        %v1008 = vsel %vm825, %v1001, 0
        %v1011 = vsel %vm825, %v1006, 0
        %1013 = vmatpush.bf16.xpose.msra.mxu0 0
        %1014 = vmatpush.bf16.xpose.msra.mxu0 0
        %1015 = vmatpush.bf16.xpose.msra.mxu0 0
        %1016 = vmatpush.bf16.xpose.msra.mxu0 0
        %1017 = vmatpush.bf16.xpose.msra.mxu0 0
        %1018 = vmatpush.bf16.xpose.msra.mxu0 0
        %1019 = vmatpush.bf16.xpose.msra.mxu0 0
        %1020 = vmatpush.bf16.xpose.msra.mxu0 %v1011
        %1021 = vmatmul.bf16.gmra.mxu0 %v1008
        %v1022 = vpop.f32.mrf.mxu0
        %v1023 = vadd.f32 0.0, %v1022
        %v1024 = vpop.f32.mrf.mxu0
        %v1025 = vadd.f32 0.0, %v1024
        %1026 = vdwg.mxu0
        %v1027 = vsel %vm825, %v1023, -inf
        %v1028 = vsel %vm825, %v1025, -inf
        %v1029 = vmax.f32 %v1027, %v1028
        %1030 = vmax.xlane.f32.xlu0 %v1029
        %v1031 = vpop.xlane.xlu0 %1030
        %v1032 = vrot.slane %v1031, 4
        %v1033 = vmax.f32 %v1031, %v1032
        %v1034 = vrot.slane %v1033, 2
        %v1035 = vmax.f32 %v1033, %v1034
        %v1036 = vrot.slane %v1035, 1
        %v1037 = vmax.f32 %v1035, %v1036
        %s1038 = vtos %v1037
        %v1039 = vstv %s1038
        %v1040 = vsub.f32 %v1023, %v1039
        %v1041 = vsub.f32 %v1025, %v1039
        %v1042 = vmul.f32 %v1040, 1.442695
        %v1043 = vpow.pop %v1042
        %v1044 = vmul.f32 %v1041, 1.442695
        %v1045 = vpow.pop %v1044
        %v1046 = vpack.c.bf16 %v1045, %v1043
        %v1047 = vsel %vm825, %v1043, 0.0
        %1048 = vadd.xlane.f32.xlu0 %v1047
        %v1049 = vpop.xlane.xlu0 %1048
        %v1050 = vsel %vm825, %v1045, 0.0
        %1051 = vadd.xlane.f32.xlu0 %v1050
        %v1052 = vpop.xlane.xlu0 %1051
        %v1053 = vrcp.pop %v1049
        %v1054 = vmul.f32 %v1049, %v1053
        %v1055 = vsub.f32 1.0, %v1054
        %v1056 = vmul.f32 %v1053, %v1055
        %v1057 = vadd.f32 %v1053, %v1056
        %vm1058 = vweird.f32 %v1049
        %vm1059 = vweird.f32 %v1053
        %vm1060 = vmor %vm1058, %vm1059
        %v1061 = vsel %vm1060, %v1053, %v1057
        %v1062 = vand.u32 2147483647, %v1049
        %vm1063 = vcmp.eq.f32.partialorder %v1062, 8.507059e+37
        %v1064 = vand.u32 %v1049, 2147483648
        %v1065 = vor.u32 1.1754944e-38, %v1064
        %v1066 = vsel %vm1063, %v1065, %v1061
        %v1067 = vmul.f32 1.0, %v1066
        %v1068 = vrcp.pop %v1052
        %v1069 = vmul.f32 %v1052, %v1068
        %v1070 = vsub.f32 1.0, %v1069
        %v1071 = vmul.f32 %v1068, %v1070
        %v1072 = vadd.f32 %v1068, %v1071
        %vm1073 = vweird.f32 %v1052
        %vm1074 = vweird.f32 %v1068
        %vm1075 = vmor %vm1073, %vm1074
        %v1076 = vsel %vm1075, %v1068, %v1072
        %v1077 = vand.u32 2147483647, %v1052
        %vm1078 = vcmp.eq.f32.partialorder %v1077, 8.507059e+37
        %v1079 = vand.u32 %v1052, 2147483648
        %v1080 = vor.u32 1.1754944e-38, %v1079
        %v1081 = vsel %vm1078, %v1080, %v1076
        %v1082 = vmul.f32 1.0, %v1081
        %v1084 = vunpack.c.l.b16 %v819
        %v1085 = vpack.c.b16 %v1084, %v1084
        %1086 = vrot.lane.b32.xlu0 %v1085, 120
        %v1087 = vpop.permute.xlu0 %1086
        %v1089 = vsel %vm825, %v1046, 0
        %v1092 = vsel %vm905, %v1087, 0
        %1094 = vmatpush.bf16.msra.mxu0 0
        %1095 = vmatpush.bf16.msra.mxu0 0
        %1096 = vmatpush.bf16.msra.mxu0 0
        %1097 = vmatpush.bf16.msra.mxu0 0
        %1098 = vmatpush.bf16.msra.mxu0 0
        %1099 = vmatpush.bf16.msra.mxu0 0
        %1100 = vmatpush.bf16.msra.mxu0 0
        %1101 = vmatpush.bf16.msra.mxu0 %v1092
        %1102 = vmatmul.bf16.gmra.mxu0 %v1089
        %v1103 = vpop.f32.mrf.mxu0
        %v1104 = vadd.f32 0.0, %v1103
        %v1105 = vpop.f32.mrf.mxu0
        %v1106 = vadd.f32 0.0, %v1105
        %1107 = vdwg.mxu0
        %v1108 = vmul.f32 %v1104, %v1067
        %v1109 = vmul.f32 %v1106, %v1082
        %1110 = vxpose.xlu0.b32.start [1/16] %v1043, 128
        %1111 = vxpose.xlu0.b32.cont [2/16] %v1045, 128
        %1112 = vxpose.xlu0.b32.cont [3/16] 0.0, 128
        %1113 = vxpose.xlu0.b32.cont [4/16] 0.0, 128
        %1114 = vxpose.xlu0.b32.cont [5/16] 0.0, 128
        %1115 = vxpose.xlu0.b32.cont [6/16] 0.0, 128
        %1116 = vxpose.xlu0.b32.cont [7/16] 0.0, 128
        %1117 = vxpose.xlu0.b32.cont [8/16] 0.0, 128
        %1118 = vxpose.xlu0.b32.cont [9/16] 0.0, 128
        %1119 = vxpose.xlu0.b32.cont [10/16] 0.0, 128
        %1120 = vxpose.xlu0.b32.cont [11/16] 0.0, 128
        %1121 = vxpose.xlu0.b32.cont [12/16] 0.0, 128
        %1122 = vxpose.xlu0.b32.cont [13/16] 0.0, 128
        %1123 = vxpose.xlu0.b32.cont [14/16] 0.0, 128
        %1124 = vxpose.xlu0.b32.cont [15/16] 0.0, 128
        %1125 = vxpose.xlu0.b32.end [16/16] 0.0, 128
        %v1126 = vpop.trf.xlu0
        %v1127 = vpop.trf.xlu0
        %v1128 = vpop.trf.xlu0
        %v1129 = vpop.trf.xlu0
        %v1130 = vpop.trf.xlu0
        %v1131 = vpop.trf.xlu0
        %v1132 = vpop.trf.xlu0
        %v1133 = vpop.trf.xlu0
        %v1134 = vpop.trf.xlu0
        %v1135 = vpop.trf.xlu0
        %v1136 = vpop.trf.xlu0
        %v1137 = vpop.trf.xlu0
        %v1138 = vpop.trf.xlu0
        %v1139 = vpop.trf.xlu0
        %v1140 = vpop.trf.xlu0
        %v1141 = vpop.trf.xlu0
        %v1142 = vsel %vm957, %v1126, 0.0
        %1143 = vadd.xlane.f32.xlu0 %v1142
        %v1144 = vpop.xlane.xlu0 %1143
        %v1145 = vrcp.pop %v1144
        %v1146 = vmul.f32 %v1144, %v1145
        %v1147 = vsub.f32 1.0, %v1146
        %v1148 = vmul.f32 %v1145, %v1147
        %v1149 = vadd.f32 %v1145, %v1148
        %vm1150 = vweird.f32 %v1144
        %vm1151 = vweird.f32 %v1145
        %vm1152 = vmor %vm1150, %vm1151
        %v1153 = vsel %vm1152, %v1145, %v1149
        %v1154 = vand.u32 2147483647, %v1144
        %vm1155 = vcmp.eq.f32.partialorder %v1154, 8.507059e+37
        %v1156 = vand.u32 %v1144, 2147483648
        %v1157 = vor.u32 1.1754944e-38, %v1156
        %v1158 = vsel %vm1155, %v1157, %v1153
        %v1159 = vmul.f32 1.0, %v1158
        %v1160 = vpack.c.bf16 %v1126, %v1126
        %1161 = vrot.lane.b32.xlu0 %v981, 120
        %v1162 = vpop.permute.xlu0 %1161
        %v1165 = vsel %vm957, %v1160, 0
        %1167 = vmatpush.bf16.msra.mxu0 0
        %1168 = vmatpush.bf16.msra.mxu0 0
        %1169 = vmatpush.bf16.msra.mxu0 0
        %1170 = vmatpush.bf16.msra.mxu0 0
        %1171 = vmatpush.bf16.msra.mxu0 0
        %1172 = vmatpush.bf16.msra.mxu0 0
        %1173 = vmatpush.bf16.msra.mxu0 0
        %1174 = vmatpush.bf16.msra.mxu0 %v1162
        %1175 = vmatmul.bf16.gmra.mxu0 %v1165
        %v1176 = vpop.f32.mrf.mxu0
        %v1177 = vadd.f32 0.0, %v1176
        %v1178 = vpop.f32.mrf.mxu0
        %1179 = vdwg.mxu0
        %v1180 = vmul.f32 %v1177, %v1159
        %1181 = vrot.lane.b32.xlu0 %v824, 112
        %v1182 = vpop.permute.xlu0 %1181
        %1183 = vrot.lane.b32.xlu0 %v1004, 112
        %v1184 = vpop.permute.xlu0 %1183
        %v1186 = vsel %vm825, %v1182, 0
        %v1189 = vsel %vm825, %v1184, 0
        %1191 = vmatpush.bf16.xpose.msra.mxu0 0
        %1192 = vmatpush.bf16.xpose.msra.mxu0 0
        %1193 = vmatpush.bf16.xpose.msra.mxu0 0
        %1194 = vmatpush.bf16.xpose.msra.mxu0 0
        %1195 = vmatpush.bf16.xpose.msra.mxu0 0
        %1196 = vmatpush.bf16.xpose.msra.mxu0 0
        %1197 = vmatpush.bf16.xpose.msra.mxu0 0
        %1198 = vmatpush.bf16.xpose.msra.mxu0 %v1189
        %1199 = vmatmul.bf16.gmra.mxu0 %v1186
        %v1200 = vpop.f32.mrf.mxu0
        %v1201 = vadd.f32 0.0, %v1200
        %v1202 = vpop.f32.mrf.mxu0
        %v1203 = vadd.f32 0.0, %v1202
        %1204 = vdwg.mxu0
        %v1205 = vsel %vm825, %v1201, -inf
        %v1206 = vsel %vm825, %v1203, -inf
        %v1207 = vmax.f32 %v1205, %v1206
        %1208 = vmax.xlane.f32.xlu0 %v1207
        %v1209 = vpop.xlane.xlu0 %1208
        %v1210 = vrot.slane %v1209, 4
        %v1211 = vmax.f32 %v1209, %v1210
        %v1212 = vrot.slane %v1211, 2
        %v1213 = vmax.f32 %v1211, %v1212
        %v1214 = vrot.slane %v1213, 1
        %v1215 = vmax.f32 %v1213, %v1214
        %s1216 = vtos %v1215
        %v1217 = vstv %s1216
        %v1218 = vsub.f32 %v1201, %v1217
        %v1219 = vsub.f32 %v1203, %v1217
        %v1220 = vmul.f32 %v1218, 1.442695
        %v1221 = vpow.pop %v1220
        %v1222 = vmul.f32 %v1219, 1.442695
        %v1223 = vpow.pop %v1222
        %v1224 = vpack.c.bf16 %v1223, %v1221
        %v1225 = vsel %vm825, %v1221, 0.0
        %1226 = vadd.xlane.f32.xlu0 %v1225
        %v1227 = vpop.xlane.xlu0 %1226
        %v1228 = vsel %vm825, %v1223, 0.0
        %1229 = vadd.xlane.f32.xlu0 %v1228
        %v1230 = vpop.xlane.xlu0 %1229
        %v1231 = vrcp.pop %v1227
        %v1232 = vmul.f32 %v1227, %v1231
        %v1233 = vsub.f32 1.0, %v1232
        %v1234 = vmul.f32 %v1231, %v1233
        %v1235 = vadd.f32 %v1231, %v1234
        %vm1236 = vweird.f32 %v1227
        %vm1237 = vweird.f32 %v1231
        %vm1238 = vmor %vm1236, %vm1237
        %v1239 = vsel %vm1238, %v1231, %v1235
        %v1240 = vand.u32 2147483647, %v1227
        %vm1241 = vcmp.eq.f32.partialorder %v1240, 8.507059e+37
        %v1242 = vand.u32 %v1227, 2147483648
        %v1243 = vor.u32 1.1754944e-38, %v1242
        %v1244 = vsel %vm1241, %v1243, %v1239
        %v1245 = vmul.f32 1.0, %v1244
        %v1246 = vrcp.pop %v1230
        %v1247 = vmul.f32 %v1230, %v1246
        %v1248 = vsub.f32 1.0, %v1247
        %v1249 = vmul.f32 %v1246, %v1248
        %v1250 = vadd.f32 %v1246, %v1249
        %vm1251 = vweird.f32 %v1230
        %vm1252 = vweird.f32 %v1246
        %vm1253 = vmor %vm1251, %vm1252
        %v1254 = vsel %vm1253, %v1246, %v1250
        %v1255 = vand.u32 2147483647, %v1230
        %vm1256 = vcmp.eq.f32.partialorder %v1255, 8.507059e+37
        %v1257 = vand.u32 %v1230, 2147483648
        %v1258 = vor.u32 1.1754944e-38, %v1257
        %v1259 = vsel %vm1256, %v1258, %v1254
        %v1260 = vmul.f32 1.0, %v1259
        %1261 = vrot.lane.b32.xlu0 %v1085, 112
        %v1262 = vpop.permute.xlu0 %1261
        %v1264 = vsel %vm825, %v1224, 0
        %v1267 = vsel %vm905, %v1262, 0
        %1269 = vmatpush.bf16.msra.mxu0 0
        %1270 = vmatpush.bf16.msra.mxu0 0
        %1271 = vmatpush.bf16.msra.mxu0 0
        %1272 = vmatpush.bf16.msra.mxu0 0
        %1273 = vmatpush.bf16.msra.mxu0 0
        %1274 = vmatpush.bf16.msra.mxu0 0
        %1275 = vmatpush.bf16.msra.mxu0 0
        %1276 = vmatpush.bf16.msra.mxu0 %v1267
        %1277 = vmatmul.bf16.gmra.mxu0 %v1264
        %v1278 = vpop.f32.mrf.mxu0
        %v1279 = vadd.f32 0.0, %v1278
        %v1280 = vpop.f32.mrf.mxu0
        %v1281 = vadd.f32 0.0, %v1280
        %1282 = vdwg.mxu0
        %v1283 = vmul.f32 %v1279, %v1245
        %v1284 = vmul.f32 %v1281, %v1260
        %1285 = vxpose.xlu0.b32.start [1/16] %v1221, 128
        %1286 = vxpose.xlu0.b32.cont [2/16] %v1223, 128
        %1287 = vxpose.xlu0.b32.cont [3/16] 0.0, 128
        %1288 = vxpose.xlu0.b32.cont [4/16] 0.0, 128
        %1289 = vxpose.xlu0.b32.cont [5/16] 0.0, 128
        %1290 = vxpose.xlu0.b32.cont [6/16] 0.0, 128
        %1291 = vxpose.xlu0.b32.cont [7/16] 0.0, 128
        %1292 = vxpose.xlu0.b32.cont [8/16] 0.0, 128
        %1293 = vxpose.xlu0.b32.cont [9/16] 0.0, 128
        %1294 = vxpose.xlu0.b32.cont [10/16] 0.0, 128
        %1295 = vxpose.xlu0.b32.cont [11/16] 0.0, 128
        %1296 = vxpose.xlu0.b32.cont [12/16] 0.0, 128
        %1297 = vxpose.xlu0.b32.cont [13/16] 0.0, 128
        %1298 = vxpose.xlu0.b32.cont [14/16] 0.0, 128
        %1299 = vxpose.xlu0.b32.cont [15/16] 0.0, 128
        %1300 = vxpose.xlu0.b32.end [16/16] 0.0, 128
        %v1301 = vpop.trf.xlu0
        %v1302 = vpop.trf.xlu0
        %v1303 = vpop.trf.xlu0
        %v1304 = vpop.trf.xlu0
        %v1305 = vpop.trf.xlu0
        %v1306 = vpop.trf.xlu0
        %v1307 = vpop.trf.xlu0
        %v1308 = vpop.trf.xlu0
        %v1309 = vpop.trf.xlu0
        %v1310 = vpop.trf.xlu0
        %v1311 = vpop.trf.xlu0
        %v1312 = vpop.trf.xlu0
        %v1313 = vpop.trf.xlu0
        %v1314 = vpop.trf.xlu0
        %v1315 = vpop.trf.xlu0
        %v1316 = vpop.trf.xlu0
        %v1317 = vsel %vm957, %v1301, 0.0
        %1318 = vadd.xlane.f32.xlu0 %v1317
        %v1319 = vpop.xlane.xlu0 %1318
        %v1320 = vrcp.pop %v1319
        %v1321 = vmul.f32 %v1319, %v1320
        %v1322 = vsub.f32 1.0, %v1321
        %v1323 = vmul.f32 %v1320, %v1322
        %v1324 = vadd.f32 %v1320, %v1323
        %vm1325 = vweird.f32 %v1319
        %vm1326 = vweird.f32 %v1320
        %vm1327 = vmor %vm1325, %vm1326
        %v1328 = vsel %vm1327, %v1320, %v1324
        %v1329 = vand.u32 2147483647, %v1319
        %vm1330 = vcmp.eq.f32.partialorder %v1329, 8.507059e+37
        %v1331 = vand.u32 %v1319, 2147483648
        %v1332 = vor.u32 1.1754944e-38, %v1331
        %v1333 = vsel %vm1330, %v1332, %v1328
        %v1334 = vmul.f32 1.0, %v1333
        %v1335 = vpack.c.bf16 %v1301, %v1301
        %1336 = vrot.lane.b32.xlu0 %v981, 112
        %v1337 = vpop.permute.xlu0 %1336
        %v1340 = vsel %vm957, %v1335, 0
        %1342 = vmatpush.bf16.msra.mxu0 0
        %1343 = vmatpush.bf16.msra.mxu0 0
        %1344 = vmatpush.bf16.msra.mxu0 0
        %1345 = vmatpush.bf16.msra.mxu0 0
        %1346 = vmatpush.bf16.msra.mxu0 0
        %1347 = vmatpush.bf16.msra.mxu0 0
        %1348 = vmatpush.bf16.msra.mxu0 0
        %1349 = vmatpush.bf16.msra.mxu0 %v1337
        %1350 = vmatmul.bf16.gmra.mxu0 %v1340
        %v1351 = vpop.f32.mrf.mxu0
        %v1352 = vadd.f32 0.0, %v1351
        %v1353 = vpop.f32.mrf.mxu0
        %1354 = vdwg.mxu0
        %v1355 = vmul.f32 %v1352, %v1334
        %1356 = vrot.lane.b32.xlu0 %v824, 104
        %v1357 = vpop.permute.xlu0 %1356
        %1358 = vrot.lane.b32.xlu0 %v1004, 104
        %v1359 = vpop.permute.xlu0 %1358
        %v1361 = vsel %vm825, %v1357, 0
        %v1364 = vsel %vm825, %v1359, 0
        %1366 = vmatpush.bf16.xpose.msra.mxu0 0
        %1367 = vmatpush.bf16.xpose.msra.mxu0 0
        %1368 = vmatpush.bf16.xpose.msra.mxu0 0
        %1369 = vmatpush.bf16.xpose.msra.mxu0 0
        %1370 = vmatpush.bf16.xpose.msra.mxu0 0
        %1371 = vmatpush.bf16.xpose.msra.mxu0 0
        %1372 = vmatpush.bf16.xpose.msra.mxu0 0
        %1373 = vmatpush.bf16.xpose.msra.mxu0 %v1364
        %1374 = vmatmul.bf16.gmra.mxu0 %v1361
        %v1375 = vpop.f32.mrf.mxu0
        %v1376 = vadd.f32 0.0, %v1375
        %v1377 = vpop.f32.mrf.mxu0
        %v1378 = vadd.f32 0.0, %v1377
        %1379 = vdwg.mxu0
        %v1380 = vsel %vm825, %v1376, -inf
        %v1381 = vsel %vm825, %v1378, -inf
        %v1382 = vmax.f32 %v1380, %v1381
        %1383 = vmax.xlane.f32.xlu0 %v1382
        %v1384 = vpop.xlane.xlu0 %1383
        %v1385 = vrot.slane %v1384, 4
        %v1386 = vmax.f32 %v1384, %v1385
        %v1387 = vrot.slane %v1386, 2
        %v1388 = vmax.f32 %v1386, %v1387
        %v1389 = vrot.slane %v1388, 1
        %v1390 = vmax.f32 %v1388, %v1389
        %s1391 = vtos %v1390
        %v1392 = vstv %s1391
        %v1393 = vsub.f32 %v1376, %v1392
        %v1394 = vsub.f32 %v1378, %v1392
        %v1395 = vmul.f32 %v1393, 1.442695
        %v1396 = vpow.pop %v1395
        %v1397 = vmul.f32 %v1394, 1.442695
        %v1398 = vpow.pop %v1397
        %v1399 = vpack.c.bf16 %v1398, %v1396
        %v1400 = vsel %vm825, %v1396, 0.0
        %1401 = vadd.xlane.f32.xlu0 %v1400
        %v1402 = vpop.xlane.xlu0 %1401
        %v1403 = vsel %vm825, %v1398, 0.0
        %1404 = vadd.xlane.f32.xlu0 %v1403
        %v1405 = vpop.xlane.xlu0 %1404
        %v1406 = vrcp.pop %v1402
        %v1407 = vmul.f32 %v1402, %v1406
        %v1408 = vsub.f32 1.0, %v1407
        %v1409 = vmul.f32 %v1406, %v1408
        %v1410 = vadd.f32 %v1406, %v1409
        %vm1411 = vweird.f32 %v1402
        %vm1412 = vweird.f32 %v1406
        %vm1413 = vmor %vm1411, %vm1412
        %v1414 = vsel %vm1413, %v1406, %v1410
        %v1415 = vand.u32 2147483647, %v1402
        %vm1416 = vcmp.eq.f32.partialorder %v1415, 8.507059e+37
        %v1417 = vand.u32 %v1402, 2147483648
        %v1418 = vor.u32 1.1754944e-38, %v1417
        %v1419 = vsel %vm1416, %v1418, %v1414
        %v1420 = vmul.f32 1.0, %v1419
        %v1421 = vrcp.pop %v1405
        %v1422 = vmul.f32 %v1405, %v1421
        %v1423 = vsub.f32 1.0, %v1422
        %v1424 = vmul.f32 %v1421, %v1423
        %v1425 = vadd.f32 %v1421, %v1424
        %vm1426 = vweird.f32 %v1405
        %vm1427 = vweird.f32 %v1421
        %vm1428 = vmor %vm1426, %vm1427
        %v1429 = vsel %vm1428, %v1421, %v1425
        %v1430 = vand.u32 2147483647, %v1405
        %vm1431 = vcmp.eq.f32.partialorder %v1430, 8.507059e+37
        %v1432 = vand.u32 %v1405, 2147483648
        %v1433 = vor.u32 1.1754944e-38, %v1432
        %v1434 = vsel %vm1431, %v1433, %v1429
        %v1435 = vmul.f32 1.0, %v1434
        %1436 = vrot.lane.b32.xlu0 %v1085, 104
        %v1437 = vpop.permute.xlu0 %1436
        %v1439 = vsel %vm825, %v1399, 0
        %v1442 = vsel %vm905, %v1437, 0
        %1444 = vmatpush.bf16.msra.mxu0 0
        %1445 = vmatpush.bf16.msra.mxu0 0
        %1446 = vmatpush.bf16.msra.mxu0 0
        %1447 = vmatpush.bf16.msra.mxu0 0
        %1448 = vmatpush.bf16.msra.mxu0 0
        %1449 = vmatpush.bf16.msra.mxu0 0
        %1450 = vmatpush.bf16.msra.mxu0 0
        %1451 = vmatpush.bf16.msra.mxu0 %v1442
        %1452 = vmatmul.bf16.gmra.mxu0 %v1439
        %v1453 = vpop.f32.mrf.mxu0
        %v1454 = vadd.f32 0.0, %v1453
        %v1455 = vpop.f32.mrf.mxu0
        %v1456 = vadd.f32 0.0, %v1455
        %1457 = vdwg.mxu0
        %v1458 = vmul.f32 %v1454, %v1420
        %v1459 = vmul.f32 %v1456, %v1435
        %1460 = vxpose.xlu0.b32.start [1/16] %v1396, 128
        %1461 = vxpose.xlu0.b32.cont [2/16] %v1398, 128
        %1462 = vxpose.xlu0.b32.cont [3/16] 0.0, 128
        %1463 = vxpose.xlu0.b32.cont [4/16] 0.0, 128
        %1464 = vxpose.xlu0.b32.cont [5/16] 0.0, 128
        %1465 = vxpose.xlu0.b32.cont [6/16] 0.0, 128
        %1466 = vxpose.xlu0.b32.cont [7/16] 0.0, 128
        %1467 = vxpose.xlu0.b32.cont [8/16] 0.0, 128
        %1468 = vxpose.xlu0.b32.cont [9/16] 0.0, 128
        %1469 = vxpose.xlu0.b32.cont [10/16] 0.0, 128
        %1470 = vxpose.xlu0.b32.cont [11/16] 0.0, 128
        %1471 = vxpose.xlu0.b32.cont [12/16] 0.0, 128
        %1472 = vxpose.xlu0.b32.cont [13/16] 0.0, 128
        %1473 = vxpose.xlu0.b32.cont [14/16] 0.0, 128
        %1474 = vxpose.xlu0.b32.cont [15/16] 0.0, 128
        %1475 = vxpose.xlu0.b32.end [16/16] 0.0, 128
        %v1476 = vpop.trf.xlu0
        %v1477 = vpop.trf.xlu0
        %v1478 = vpop.trf.xlu0
        %v1479 = vpop.trf.xlu0
        %v1480 = vpop.trf.xlu0
        %v1481 = vpop.trf.xlu0
        %v1482 = vpop.trf.xlu0
        %v1483 = vpop.trf.xlu0
        %v1484 = vpop.trf.xlu0
        %v1485 = vpop.trf.xlu0
        %v1486 = vpop.trf.xlu0
        %v1487 = vpop.trf.xlu0
        %v1488 = vpop.trf.xlu0
        %v1489 = vpop.trf.xlu0
        %v1490 = vpop.trf.xlu0
        %v1491 = vpop.trf.xlu0
        %v1492 = vsel %vm957, %v1476, 0.0
        %1493 = vadd.xlane.f32.xlu0 %v1492
        %v1494 = vpop.xlane.xlu0 %1493
        %v1495 = vrcp.pop %v1494
        %v1496 = vmul.f32 %v1494, %v1495
        %v1497 = vsub.f32 1.0, %v1496
        %v1498 = vmul.f32 %v1495, %v1497
        %v1499 = vadd.f32 %v1495, %v1498
        %vm1500 = vweird.f32 %v1494
        %vm1501 = vweird.f32 %v1495
        %vm1502 = vmor %vm1500, %vm1501
        %v1503 = vsel %vm1502, %v1495, %v1499
        %v1504 = vand.u32 2147483647, %v1494
        %vm1505 = vcmp.eq.f32.partialorder %v1504, 8.507059e+37
        %v1506 = vand.u32 %v1494, 2147483648
        %v1507 = vor.u32 1.1754944e-38, %v1506
        %v1508 = vsel %vm1505, %v1507, %v1503
        %v1509 = vmul.f32 1.0, %v1508
        %v1510 = vpack.c.bf16 %v1476, %v1476
        %1511 = vrot.lane.b32.xlu0 %v981, 104
        %v1512 = vpop.permute.xlu0 %1511
        %v1515 = vsel %vm957, %v1510, 0
        %1517 = vmatpush.bf16.msra.mxu0 0
        %1518 = vmatpush.bf16.msra.mxu0 0
        %1519 = vmatpush.bf16.msra.mxu0 0
        %1520 = vmatpush.bf16.msra.mxu0 0
        %1521 = vmatpush.bf16.msra.mxu0 0
        %1522 = vmatpush.bf16.msra.mxu0 0
        %1523 = vmatpush.bf16.msra.mxu0 0
        %1524 = vmatpush.bf16.msra.mxu0 %v1512
        %1525 = vmatmul.bf16.gmra.mxu0 %v1515
        %v1526 = vpop.f32.mrf.mxu0
        %v1527 = vadd.f32 0.0, %v1526
        %v1528 = vpop.f32.mrf.mxu0
        %1529 = vdwg.mxu0
        %v1530 = vmul.f32 %v1527, %v1509
        %1533 = vrot.lane.b32.xlu0 %v1108, 8
        %v1534 = vpop.permute.xlu0 %1533
        %1535 = vrot.lane.b32.xlu0 %v1109, 8
        %v1536 = vpop.permute.xlu0 %1535
        %1541 = vrot.lane.b32.xlu0 %v1283, 16
        %v1542 = vpop.permute.xlu0 %1541
        %1543 = vrot.lane.b32.xlu0 %v1284, 16
        %v1544 = vpop.permute.xlu0 %1543
        %1549 = vrot.lane.b32.xlu0 %v1458, 24
        %v1550 = vpop.permute.xlu0 %1549
        %1551 = vrot.lane.b32.xlu0 %v1459, 24
        %v1552 = vpop.permute.xlu0 %1551
        %v1555 = vsel %vm825, %v923, %v1534
        %v1556 = vsel %vm825, %v924, %v1536
        %v1557 = vsel %vm957, %v1555, %v1542
        %v1558 = vsel %vm957, %v1556, %v1544
        %vm1559 = vcmask 195584
        %v1560 = vsel %vm1559, %v1557, %v1550
        %v1561 = vsel %vm1559, %v1558, %v1552
        %v1562 = vpack.c.bf16 %v1561, %v1560
        %1564 = vrot.lane.b32.xlu0 %v1180, 8
        %v1565 = vpop.permute.xlu0 %1564
        %1568 = vrot.lane.b32.xlu0 %v1355, 16
        %v1569 = vpop.permute.xlu0 %1568
        %1572 = vrot.lane.b32.xlu0 %v1530, 24
        %v1573 = vpop.permute.xlu0 %1572
        %v1575 = vsel %vm825, %v999, %v1565
        %v1576 = vsel %vm957, %v1575, %v1569
        %v1577 = vsel %vm1559, %v1576, %v1573
        %v1578 = vpack.c.bf16 %v1577, %v1577
        %v1579 = vld [vmem:[#allocation13] sm:$0xf]
        %v1580 = vld [vmem:[#allocation13 + $0x4] sm:$0xf]
        %v1581 = vld [vmem:[#allocation13 + $0x8] sm:$0xf]
        %v1582 = vld [vmem:[#allocation13 + $0xc] sm:$0xf]
        %v1583 = vld [vmem:[%s11] sm:$0x1]
        %v1585 = vperm.slane %v1583, 0
        %v1591 = vunpack.c.l.b16 %v1579
        %v1592 = vunpack.c.l.b16 %v1580
        %v1593 = vunpack.c.l.b16 %v1581
        %v1594 = vunpack.c.l.b16 %v1582
        %v1595 = vpack.c.b16 %v1592, %v1591
        %v1596 = vpack.c.b16 %v1594, %v1593
        %v1600 = vsel %vm693, %v1562, 0
        %1602 = vmatpush.bf16.msra.mxu0 0
        %1603 = vmatpush.bf16.msra.mxu0 0
        %1604 = vmatpush.bf16.msra.mxu0 0
        %1605 = vmatpush.bf16.msra.mxu0 0
        %1606 = vmatpush.bf16.msra.mxu0 0
        %1607 = vmatpush.bf16.msra.mxu0 0
        %1608 = vmatpush.bf16.msra.mxu0 %v1596
        %1609 = vmatpush.bf16.msra.mxu0 %v1595
        %1610 = vmatmul.bf16.gmra.mxu0 %v1600
        %v1611 = vpop.f32.mrf.mxu0
        %v1612 = vadd.f32 %v1585, %v1611
        %v1613 = vpop.f32.mrf.mxu0
        %v1614 = vadd.f32 %v1585, %v1613
        %1615 = vdwg.mxu0
        %1616 = vst [vmem:[%s656] sm:$0xff] %v1612
        %1617 = vst [vmem:[%s656 + $0x8] sm:$0xff] %v1614
        %v1618 = vld [vmem:[#allocation14] sm:$0xf]
        %v1619 = vld [vmem:[#allocation14 + $0x4] sm:$0xf]
        %v1620 = vld [vmem:[#allocation14 + $0x8] sm:$0xf]
        %v1621 = vld [vmem:[#allocation14 + $0xc] sm:$0xf]
        %v1622 = vld [vmem:[%s13] sm:$0x1]
        %v1624 = vperm.slane %v1622, 0
        %v1630 = vunpack.c.l.b16 %v1618
        %v1631 = vunpack.c.l.b16 %v1619
        %v1632 = vunpack.c.l.b16 %v1620
        %v1633 = vunpack.c.l.b16 %v1621
        %v1634 = vpack.c.b16 %v1631, %v1630
        %v1635 = vpack.c.b16 %v1633, %v1632
        %v1639 = vsel %vm693, %v1578, 0
        %1641 = vmatpush.bf16.msra.mxu0 0
        %1642 = vmatpush.bf16.msra.mxu0 0
        %1643 = vmatpush.bf16.msra.mxu0 0
        %1644 = vmatpush.bf16.msra.mxu0 0
        %1645 = vmatpush.bf16.msra.mxu0 0
        %1646 = vmatpush.bf16.msra.mxu0 0
        %1647 = vmatpush.bf16.msra.mxu0 %v1635
        %1648 = vmatpush.bf16.msra.mxu0 %v1634
        %1649 = vmatmul.bf16.gmra.mxu0 %v1639
        %v1650 = vpop.f32.mrf.mxu0
        %v1651 = vadd.f32 %v1624, %v1650
        %v1652 = vpop.f32.mrf.mxu0
        %1653 = vdwg.mxu0
        %1654 = vst [vmem:[%s663] sm:$0xff] %v1651
        %s1655 = sand.u32 %s354, 1
        %s1656 = scalar_lea.sflag [#allocation4], %s1655
        %s1657 = sand.u32 %s354, 1
        %s1658 = smul.addr %s1657, 16
        %s1659 = scalar_lea.vmem [#allocation16], %s1658
        %s1660 = sand.u32 %s380, 1
        %s1661 = scalar_lea.sflag [#allocation18], %s1660
        %s1662 = sand.u32 %s380, 1
        %s1663 = smul.addr %s1662, 8
        %s1664 = scalar_lea.vmem [#allocation17], %s1663
        // Predicated region
        $region109: #{tpu_custom_call.1} parent=75 // pred_check
          %p1665 = pneg %p364
        $region110: #{tpu_custom_call.1} parent=75 // pred_check_branch
          %1667 = sbr.rel (%p1665) target = $region112
        $region111: #{tpu_custom_call.1} parent=75 // pred_region
          %1669 = vsyncadd %s1656, 0
          %s1670 = smul.addr %s42, 2
          %s1671 = smul.addr %s1670, 8
          %s1672 = scalar_lea.hbm %s14, %s1671
          %s1673 = sshll.u32 %s1659, 4
          %s1674 = int_to_ptr.vmem [resolvable:$true] %s1673
          %s1675 = sshll.u32 %s1672, 4
          %s1676 = int_to_ptr.hbm [resolvable:$true] %s1675
          %1681 = dma.vmem_to_hbm [thread:$0]  %s1674, 256, %s1676, %s1656, 128, 128, 8
        $region112: #{tpu_custom_call.1} parent=75 // pred_fallthru
          _
        // Predicated region
        $region113: #{tpu_custom_call.1} parent=75 // pred_check
          %p1682 = pneg %p390
        $region114: #{tpu_custom_call.1} parent=75 // pred_check_branch
          %1684 = sbr.rel (%p1682) target = $region116
        $region115: #{tpu_custom_call.1} parent=75 // pred_region
          %1686 = vsyncadd %s1661, 0
          %s1687 = smul.addr %s42, 8
          %s1688 = scalar_lea.hbm %s15, %s1687
          %s1690 = sshll.u32 %s1664, 4
          %s1691 = int_to_ptr.vmem [resolvable:$true] %s1690
          %s1692 = sshll.u32 %s1688, 4
          %s1693 = int_to_ptr.hbm [resolvable:$true] %s1692
          %1695 = dma.vmem_to_hbm [thread:$0]  %s1691, 128, %s1693, %s1661
        $region116: #{tpu_custom_call.1} parent=75 // pred_fallthru
          _
      $region76: #{tpu_custom_call.1} parent=5 // pred_fallthru
        _
      %p1696 = scmp.le.s32.totalorder 2, %s37
      // Predicated region
      $region117: #{tpu_custom_call.1} parent=5 // pred_check
        %p1697 = pneg %p1696
      $region118: #{tpu_custom_call.1} parent=5 // pred_check_branch
        %1699 = sbr.rel (%p1697) target = $region120
      $region119: #{tpu_custom_call.1} parent=5 // pred_region
        %s1700 = ssub.s32 %s37, 2
        // Predicated region
        $region121: #{tpu_custom_call.1} parent=119 // pred_check
          %p1701 = pneg %p370
        $region122: #{tpu_custom_call.1} parent=119 // pred_check_branch
          %1703 = sbr.rel (%p1701) target = $region124
        $region123: #{tpu_custom_call.1} parent=119 // pred_region
          %s1704 = sand.u32 %s355, 1
          %s1705 = scalar_lea.sflag [#allocation4], %s1704
          %s1706 = sand.u32 %s355, 1
          %s1707 = smul.addr %s1706, 16
          %s1708 = scalar_lea.vmem [#allocation16], %s1707
          %1710 = dma.done %s1705, 256
        $region124: #{tpu_custom_call.1} parent=119 // pred_fallthru
          _
        // Predicated region
        $region125: #{tpu_custom_call.1} parent=119 // pred_check
          %p1711 = pneg %p396
        $region126: #{tpu_custom_call.1} parent=119 // pred_check_branch
          %1713 = sbr.rel (%p1711) target = $region128
        $region127: #{tpu_custom_call.1} parent=119 // pred_region
          %s1714 = sand.u32 %s381, 1
          %s1715 = scalar_lea.sflag [#allocation18], %s1714
          %s1716 = sand.u32 %s381, 1
          %s1717 = smul.addr %s1716, 8
          %s1718 = scalar_lea.vmem [#allocation17], %s1717
          %1720 = dma.done %s1715, 128
        $region128: #{tpu_custom_call.1} parent=119 // pred_fallthru
          _
      $region120: #{tpu_custom_call.1} parent=5 // pred_fallthru
        _
    $region6: #{tpu_custom_call.1} parent=1 // loop_footer
      %s41 = sadd.s32 1, %s37
    $region7: #{tpu_custom_call.1} parent=1 // loop_footer_branch
      %36 = sbr.rel target = $region3
    $region8: #{tpu_custom_call.1} parent=1 // loop_exit
      _
    %1721 = vsyncpa [#allocation3], 1
    %s1722 = scalar_lea.sflag [#allocation3], 1
    %1723 = vsyncpa %s1722, 1
    %1724 = vsyncpa [#allocation6], 1
    %s1725 = scalar_lea.sflag [#allocation6], 1
    %1726 = vsyncpa %s1725, 1
    %1727 = vsyncpa [#allocation9], 1
    %1728 = vsyncpa [#allocation12], 1
    %1729 = vsyncpa [#allocation15], 1
    %1730 = vsyncpa [#allocation4], 1
    %s1731 = scalar_lea.sflag [#allocation4], 1
    %1732 = vsyncpa %s1731, 1
    %1733 = vsyncpa [#allocation18], 1
    %s1734 = scalar_lea.sflag [#allocation18], 1
    %1735 = vsyncpa %s1734, 1

</llo_original>
